<compile_context>
chip_gen: v6e
topology: v6e:2x2x1
jax: 0.10.0
libtpu: 0.0.40
codegen_flags: <defaults>
</compile_context>

<pallas_src>
import functools

import jax
import jax.numpy as jnp
from jax import lax
from jax.experimental import pallas as pl
from jax.experimental.pallas import tpu as pltpu

EPS_LN = 1e-6
EPS_GRN = 1e-6


def _round_up(x, m):
    return ((x + m - 1) // m) * m


def _cdiv(a, b):
    return (a + b - 1) // b


def _gelu(x, approx):
    if approx:
        # tanh approximation -> EUP (frees the VALU slot; not bit-exact vs nn.GELU()).
        c = 0.7978845608028654
        return 0.5 * x * (1.0 + jnp.tanh(c * (x + 0.044715 * x * x * x)))
    return 0.5 * x * (1.0 + lax.erf(x * 0.7071067811865476))  # exact erf (nn.GELU default)


def _ln_gemm1_gelu(x, w1_bf16, b1, c_real, c_pad, approx_gelu):
    """LayerNorm (no affine, eps=1e-6) over real channels, then Linear(C->4C)+GELU.

    x: (T, Cp) f32; channel lanes >= c_real (if any) are zero.  Returns (T, C4p) f32;
    padded hidden channels come out exactly 0 (zero-padded w1 columns and b1).
    """
    inv_c = 1.0 / c_real
    mu = jnp.sum(x, axis=-1, keepdims=True) * inv_c            # zero pads don't bias the sum
    xc = x - mu
    if c_pad != c_real:
        lane = lax.broadcasted_iota(jnp.int32, x.shape, 1)
        xc = jnp.where(lane < c_real, xc, 0.0)                 # mask padded lanes for var / matmul
    var = jnp.sum(xc * xc, axis=-1, keepdims=True) * inv_c     # biased variance (matches nn.LayerNorm)
    xn = xc * lax.rsqrt(var + EPS_LN)
    h = jnp.dot(xn.astype(jnp.bfloat16), w1_bf16,
                preferred_element_type=jnp.float32) + b1
    return _gelu(h, approx_gelu)


# ---------------- pass 1: accumulate sum_{HW}(h^2) per hidden channel ---------------- #
def _grn_stats_kernel(x_ref, w1_ref, b1_ref, gx2_ref, *,
                      c_real, c_pad, hw_real, tile_hw, t_per_shard,
                      approx_gelu, needs_row_mask):
    ts = pl.program_id(2)

    @pl.when(ts == 0)
    def _():
        gx2_ref[...] = jnp.zeros_like(gx2_ref)

    h = _ln_gemm1_gelu(x_ref[0], w1_ref[...], b1_ref[...], c_real, c_pad, approx_gelu)
    if needs_row_mask:
        # mask rows beyond HW (ragged last tile and/or duplicated clamped tiles)
        tile_id = pl.program_id(1) * t_per_shard + ts
        row = lax.broadcasted_iota(jnp.int32, h.shape, 0) + tile_id * tile_hw
        h = jnp.where(row < hw_real, h, 0.0)
    gx2_ref[0] += jnp.sum(h * h, axis=0, keepdims=True)         # (1, C4p) f32 accumulation


# ---------------- pass 2: recompute h, apply hoisted GRN scale, GEMM2, residual ---------------- #
def _grn_apply_kernel(scale1_ref, beta_ref, x_ref, w1_ref, b1_ref, w2_ref, b2_ref, o_ref, *,
                      c_real, c_pad, approx_gelu):
    x = x_ref[0]                                                 # (tile_hw, Cp) f32
    h = _ln_gemm1_gelu(x, w1_ref[...], b1_ref[...], c_real, c_pad, approx_gelu)
    # GRN (+ identity path) with scale1 = 1 + gamma * Nx precomputed in XLA.
    # (Dropout p=0.0 is the identity — omitted.)
    h = h * scale1_ref[0] + beta_ref[...]
    y = jnp.dot(h.astype(jnp.bfloat16), w2_ref[...],
                preferred_element_type=jnp.float32) + b2_ref[...]
    o_ref[0] = x + y                                             # residual with pre-norm input


# ---------------- wrapper helpers ---------------- #
def _vmem_budget_bytes():
    cap = None
    try:
        cap = getattr(pltpu.get_tpu_info(), "vmem_capacity_bytes", None)
    except Exception:
        cap = None
    if cap is None:
        return 44 * 1024 * 1024            # unknown chip: stay safe for 64-MiB v7x
    if cap <= 64 * 1024 * 1024:
        return 44 * 1024 * 1024            # v7x-class (64 MiB physical per TC)
    return 100 * 1024 * 1024               # v5e / v6e (128 MiB physical)


def _pick_tile_hw(requested, hw, c_pad, c4_pad, budget_bytes, single_buffer):
    t = max(8, min(_round_up(requested, 8), _round_up(hw, 8)))
    wbuf = 1 if single_buffer else 2

    def footprint(th):
        io = 2 * th * c_pad * 4 * 2                      # x in + out, double-buffered f32
        hid = th * c4_pad * (4 + 2)                      # f32 h + bf16 cast
        w = wbuf * 2 * c_pad * c4_pad * 2                # bf16 w1 + w2
        return io + hid + w + (2 << 20)

    while t > 64 and footprint(t) > budget_bytes:
        t = max(64, _round_up(t // 2, 8))
    return t


def _blockspec(block_shape, index_map, single=False):
    """BlockSpec; grid-invariant operands get single-buffering when supported."""
    if single and hasattr(pl, "Buffered"):
        try:
            return pl.BlockSpec(block_shape, index_map, pipeline_mode=pl.Buffered(1))
        except TypeError:
            pass
    return pl.BlockSpec(block_shape, index_map)


def _ffb_nhwc(x_flat, params, *, tile_hw, approx_gelu, single_buffer_consts):
    w1, b1, gamma, beta, w2, b2 = params
    N, HW, C = x_flat.shape
    C4 = 4 * C

    Cp = _round_up(C, 128)
    C4p = _round_up(C4, 128)
    pad_c = (Cp != C)                       # Cp == C implies C4p == C4

    if pad_c:
        # ragged C: pad channel lanes (cheap; only happens for tiny C)
        x_in = jnp.pad(x_flat, ((0, 0), (0, 0), (0, Cp - C)))
        w1_p = jnp.pad(w1, ((0, Cp - C), (0, C4p - C4))).astype(jnp.bfloat16)
        b1_p = jnp.pad(b1, ((0, 0), (0, C4p - C4)))
        g_p = jnp.pad(gamma, ((0, 0), (0, C4p - C4)))
        be_p = jnp.pad(beta, ((0, 0), (0, C4p - C4)))
        w2_p = jnp.pad(w2, ((0, C4p - C4), (0, Cp - C))).astype(jnp.bfloat16)
        b2_p = jnp.pad(b2, ((0, 0), (0, Cp - C)))
    else:
        # fast path: zero extra HBM copies of the activations
        x_in, b1_p, g_p, be_p, b2_p = x_flat, b1, gamma, beta, b2
        w1_p = w1.astype(jnp.bfloat16)
        w2_p = w2.astype(jnp.bfloat16)

    budget = _vmem_budget_bytes()
    tile_hw = _pick_tile_hw(tile_hw, HW, Cp, C4p, budget, single_buffer_consts)
    T = _cdiv(HW, tile_hw)
    # split the pass-1 HW reduction across 2 shards (helps v7x's 2 TCs when N is small)
    S = 2 if T >= 2 else 1
    Tper = _cdiv(T, S)
    needs_row_mask = (S * Tper * tile_hw) != HW

    if S * Tper == T:
        x_map_p1 = lambda n, s, ts: (n, s * Tper + ts, 0)
    else:
        # clamp so the duplicated tail tile never issues an out-of-range DMA;
        # its rows are logically >= HW and get masked in-kernel.
        x_map_p1 = lambda n, s, ts: (n, jnp.minimum(s * Tper + ts, T - 1), 0)

    # ---- pass 1: per-(batch, shard) partial sum of h^2 over spatial ----
    cost1 = pl.CostEstimate(
        flops=int(N * HW * (2 * C * C4 + 8 * C4)),
        transcendentals=int(N * HW * C4),
        bytes_accessed=int(N * HW * Cp * 4 + Cp * C4p * 2 + N * S * C4p * 4),
    )
    gx2_parts = pl.pallas_call(
        functools.partial(_grn_stats_kernel, c_real=C, c_pad=Cp, hw_real=HW,
                          tile_hw=tile_hw, t_per_shard=Tper,
                          approx_gelu=approx_gelu, needs_row_mask=needs_row_mask),
        out_shape=jax.ShapeDtypeStruct((N * S, 1, C4p), jnp.float32),
        grid_spec=pltpu.PrefetchScalarGridSpec(
            num_scalar_prefetch=0,
            grid=(N, S, Tper),
            in_specs=[
                pl.BlockSpec((1, tile_hw, Cp), x_map_p1),                           # x tile
                _blockspec((Cp, C4p), lambda n, s, ts: (0, 0), single_buffer_consts),  # w1 bf16
                _blockspec((1, C4p), lambda n, s, ts: (0, 0), single_buffer_consts),   # b1
            ],
            out_specs=pl.BlockSpec((1, 1, C4p), lambda n, s, ts: (n * S + s, 0, 0)),
        ),
        compiler_params=pltpu.CompilerParams(
            dimension_semantics=("parallel", "parallel", "arbitrary"),
            vmem_limit_bytes=budget),
        cost_estimate=cost1,
    )(x_in, w1_p, b1_p)

    # ---- hoisted GRN scalar math (tiny XLA op between the passes) ----
    gx2 = gx2_parts.reshape(N, S, C4p).sum(axis=1)                 # (N, C4p)
    gx = jnp.sqrt(gx2)                                             # ||h||_2 over (H, W)
    mean_gx = jnp.sum(gx, axis=-1, keepdims=True) * (1.0 / C4)     # padded lanes are 0
    nx = gx / (mean_gx + EPS_GRN)
    scale1 = (1.0 + g_p * nx).reshape(N, 1, C4p).astype(jnp.float32)  # gamma*(h*Nx)+h = h*scale1

    # ---- pass 2: recompute h per tile, apply GRN scale, GEMM2, residual ----
    cost2 = pl.CostEstimate(
        flops=int(N * HW * (4 * C * C4 + 10 * C4 + 8 * C)),
        transcendentals=int(N * HW * C4),
        bytes_accessed=int(2 * N * HW * Cp * 4 + 2 * Cp * C4p * 2 + N * C4p * 4),
    )
    out_p = pl.pallas_call(
        functools.partial(_grn_apply_kernel, c_real=C, c_pad=Cp, approx_gelu=approx_gelu),
        out_shape=jax.ShapeDtypeStruct((N, HW, Cp), jnp.float32),
        grid_spec=pltpu.PrefetchScalarGridSpec(
            num_scalar_prefetch=0,
            grid=(N, T),
            in_specs=[
                pl.BlockSpec((1, 1, C4p), lambda n, t: (n, 0, 0)),                    # scale1 (per-batch)
                _blockspec((1, C4p), lambda n, t: (0, 0), single_buffer_consts),      # beta
                pl.BlockSpec((1, tile_hw, Cp), lambda n, t: (n, t, 0)),               # x tile
                _blockspec((Cp, C4p), lambda n, t: (0, 0), single_buffer_consts),     # w1 bf16
                _blockspec((1, C4p), lambda n, t: (0, 0), single_buffer_consts),      # b1
                _blockspec((C4p, Cp), lambda n, t: (0, 0), single_buffer_consts),     # w2 bf16
                _blockspec((1, Cp), lambda n, t: (0, 0), single_buffer_consts),       # b2
            ],
            out_specs=pl.BlockSpec((1, tile_hw, Cp), lambda n, t: (n, t, 0)),
        ),
        compiler_params=pltpu.CompilerParams(
            dimension_semantics=("parallel", "parallel"),
            vmem_limit_bytes=budget),
        cost_estimate=cost2,
    )(scale1, be_p, x_in, w1_p, b1_p, w2_p, b2_p)

    return out_p[:, :, :C] if pad_c else out_p


def feedforward_block_nhwc(x_flat, params, *, tile_hw=512, approx_gelu=False):
    """x_flat: (N, HW, C) float32 -> (N, HW, C) float32 (preferred entry point)."""
    try:
        return _ffb_nhwc(x_flat, params, tile_hw=tile_hw, approx_gelu=approx_gelu,
                         single_buffer_consts=True)
    except Exception:
        # fallback for jax versions without pl.Buffered(1) single-buffering support
        return _ffb_nhwc(x_flat, params, tile_hw=tile_hw, approx_gelu=approx_gelu,
                         single_buffer_consts=False)


def feedforward_block(x_nchw, params, *, tile_hw=512, approx_gelu=False):
    """PyTorch-style entry point: x_nchw (N, C, H, W) float32 -> (N, C, H, W)."""
    # TODO(synk): the two transposes are full HBM round trips; use the NHWC entry end-to-end.
    N, C, H, W = x_nchw.shape
    x_flat = jnp.transpose(x_nchw, (0, 2, 3, 1)).reshape(N, H * W, C)
    out_flat = feedforward_block_nhwc(x_flat, params, tile_hw=tile_hw, approx_gelu=approx_gelu)
    return jnp.transpose(out_flat.reshape(N, H, W, C), (0, 3, 1, 2))


def reference_jax(x_nchw, params):
    """Pure-JAX f32 reference mirroring the PyTorch forward (for validation)."""
    w1, b1, gamma, beta, w2, b2 = params
    x = jnp.transpose(x_nchw, (0, 2, 3, 1))                       # NHWC
    mu = jnp.mean(x, axis=-1, keepdims=True)
    var = jnp.mean((x - mu) ** 2, axis=-1, keepdims=True)
    xn = (x - mu) * lax.rsqrt(var + EPS_LN)
    h = xn @ w1 + b1[0]
    h = _gelu(h, False)
    gx = jnp.sqrt(jnp.sum(h * h, axis=(1, 2), keepdims=True))     # (N,1,1,4C)
    nx = gx / (jnp.mean(gx, axis=-1, keepdims=True) + EPS_GRN)
    h = gamma[0] * (h * nx) + beta[0] + h
    y = h @ w2 + b2[0]
    return x_nchw + jnp.transpose(y, (0, 3, 1, 2))


def init_params(key, c):
    c4 = 4 * c
    k1, k2, k3, k4, k5, k6 = jax.random.split(key, 6)
    lim1 = 1.0 / jnp.sqrt(jnp.float32(c))
    lim2 = 1.0 / jnp.sqrt(jnp.float32(c4))
    w1 = jax.random.uniform(k1, (c, c4), jnp.float32, -lim1, lim1)
    b1 = jax.random.uniform(k2, (1, c4), jnp.float32, -lim1, lim1)
    w2 = jax.random.uniform(k3, (c4, c), jnp.float32, -lim2, lim2)
    b2 = jax.random.uniform(k4, (1, c), jnp.float32, -lim2, lim2)
    # Module initializes GRN gamma/beta to zeros; use nonzero values here so the
    # gamma*(h*Nx)+beta path is actually exercised by the correctness check.
    gamma = 0.5 * jax.random.normal(k5, (1, c4), jnp.float32)
    beta = 0.5 * jax.random.normal(k6, (1, c4), jnp.float32)
    return (w1, b1, gamma, beta, w2, b2)


if __name__ == "__main__":
    key = jax.random.PRNGKey(0)

    def run_case(case_key, n, c, h, w, tile_hw):
        kx, kp = jax.random.split(case_key)
        x = jax.random.normal(kx, (n, c, h, w), jnp.float32)
        params = init_params(kp, c)
        out = jax.block_until_ready(feedforward_block(x, params, tile_hw=tile_hw))
        ref = jax.block_until_ready(reference_jax(x, params))
        assert out.shape == (n, c, h, w)
        max_err = float(jnp.max(jnp.abs(out - ref)))
        # Tolerance accounts for bf16 MXU matmuls (f32 accumulation) vs the f32 reference.
        assert jnp.allclose(out, ref, atol=7.5e-2, rtol=2e-2), \
            f"mismatch vs reference (max |err|={max_err})"

    k1, k2 = jax.random.split(key)
    # ragged-C path: channel padding, multi-tile HW with a non-dividing tile (exercises
    # the clamped/masked split reduction in pass 1 and partial tail blocks in pass 2).
    run_case(k1, 2, 4, 16, 16, tile_hw=96)
    # lane-aligned fast path: no activation padding or output slicing at all.
    run_case(k2, 1, 128, 16, 16, tile_hw=512)

    print("KERNEL_OK")
</pallas_src>

<mosaic_0001>
module attributes {stable_mosaic.version = 11 : i64} {
  func.func @_grn_stats_kernel(%arg0: i32, %arg1: i32, %arg2: i32, %arg3: memref<1x96x128xf32, #tpu.memory_space<vmem>>, %arg4: memref<128x128xbf16, #tpu.memory_space<vmem>>, %arg5: memref<1x128xf32, #tpu.memory_space<vmem>>, %arg6: memref<1x1x128xf32, #tpu.memory_space<vmem>>) attributes {dimension_semantics = [#tpu.dimension_semantics<parallel>, #tpu.dimension_semantics<parallel>, #tpu.dimension_semantics<arbitrary>], iteration_bounds = array<i64: 2, 2, 2>, scalar_prefetch = 0 : i64, scratch_operands = 0 : i64, tpu.core_type = #tpu.core_type<tc>, window_params = [{transform_indices = @transform_0, window_bounds = array<i64: 1, 96, 128>}, {pipeline_mode = #tpu.pipeline_mode<synchronous>, transform_indices = @transform_1, window_bounds = array<i64: 128, 128>}, {pipeline_mode = #tpu.pipeline_mode<synchronous>, transform_indices = @transform_2, window_bounds = array<i64: 1, 128>}, {transform_indices = @transform_3, window_bounds = array<i64: 1, 1, 128>}]} {
    %c0_i32 = arith.constant 0 : i32
    %0 = arith.cmpi eq, %arg2, %c0_i32 : i32
    %1 = arith.extui %0 : i1 to i32
    %c0_i32_0 = arith.constant 0 : i32
    %2 = arith.cmpi ne, %1, %c0_i32_0 : i32
    scf.if %2 {
      %cst_24 = arith.constant 0.000000e+00 : f32
      %59 = vector.broadcast %cst_24 : f32 to vector<1x1x128xf32>
      %c0_25 = arith.constant 0 : index
      %c0_26 = arith.constant 0 : index
      %c0_27 = arith.constant 0 : index
      %60 = vector.load %arg6[%c0_25, %c0_26, %c0_27] : memref<1x1x128xf32, #tpu.memory_space<vmem>>, vector<1x1x128xf32>
      tpu.vector_store %arg6[%c0_25, %c0_26, %c0_27], %59 {strides = array<i32>} : memref<1x1x128xf32, #tpu.memory_space<vmem>>, vector<1x1x128xf32>,
    } else {
    }
    %c0 = arith.constant 0 : index
    %c0_1 = arith.constant 0 : index
    %c0_2 = arith.constant 0 : index
    %3 = vector.load %arg3[%c0, %c0_1, %c0_2] : memref<1x96x128xf32, #tpu.memory_space<vmem>>, vector<1x96x128xf32>
    %4 = vector.shape_cast %3 : vector<1x96x128xf32> to vector<96x128xf32>
    %c0_3 = arith.constant 0 : index
    %c0_4 = arith.constant 0 : index
    %5 = vector.load %arg4[%c0_3, %c0_4] : memref<128x128xbf16, #tpu.memory_space<vmem>>, vector<128x128xbf16>
    %c0_5 = arith.constant 0 : index
    %c0_6 = arith.constant 0 : index
    %6 = vector.load %arg5[%c0_5, %c0_6] : memref<1x128xf32, #tpu.memory_space<vmem>>, vector<1x128xf32>
    %cst = arith.constant dense<0.000000e+00> : vector<96xf32>
    %7 = vector.multi_reduction <add>, %4, %cst [1] : vector<96x128xf32> to vector<96xf32>
    %8 = vector.shape_cast %7 : vector<96xf32> to vector<96x1xf32>
    %cst_7 = arith.constant 2.500000e-01 : f32
    %9 = vector.broadcast %cst_7 : f32 to vector<96x1xf32>
    %10 = arith.mulf %8, %9 : vector<96x1xf32>
    %11 = vector.broadcast %10 : vector<96x1xf32> to vector<96x128xf32>
    %12 = arith.subf %4, %11 : vector<96x128xf32>
    %13 = tpu.iota {dimensions = array<i32: 1>} : vector<96x128xi32>
    %c4_i32 = arith.constant 4 : i32
    %14 = vector.broadcast %c4_i32 : i32 to vector<96x128xi32>
    %15 = arith.cmpi slt, %13, %14 : vector<96x128xi32>
    %cst_8 = arith.constant 0.000000e+00 : f32
    %16 = vector.broadcast %cst_8 : f32 to vector<96x128xf32>
    %17 = arith.select %15, %12, %16 : vector<96x128xi1>, vector<96x128xf32>
    %18 = arith.mulf %17, %17 : vector<96x128xf32>
    %cst_9 = arith.constant dense<0.000000e+00> : vector<96xf32>
    %19 = vector.multi_reduction <add>, %18, %cst_9 [1] : vector<96x128xf32> to vector<96xf32>
    %20 = vector.shape_cast %19 : vector<96xf32> to vector<96x1xf32>
    %cst_10 = arith.constant 2.500000e-01 : f32
    %21 = vector.broadcast %cst_10 : f32 to vector<96x1xf32>
    %22 = arith.mulf %20, %21 : vector<96x1xf32>
    %cst_11 = arith.constant 9.99999997E-7 : f32
    %23 = vector.broadcast %cst_11 : f32 to vector<96x1xf32>
    %24 = arith.addf %22, %23 : vector<96x1xf32>
    %25 = math.rsqrt %24 : vector<96x1xf32>
    %26 = vector.broadcast %25 : vector<96x1xf32> to vector<96x128xf32>
    %27 = arith.mulf %17, %26 : vector<96x128xf32>
    %28 = arith.truncf %27 : vector<96x128xf32> to vector<96x128xbf16>
    %cst_12 = arith.constant dense<0.000000e+00> : vector<96x128xf32>
    %29 = tpu.matmul %28, %5, %cst_12 {dimension_numbers = #tpu.dot_dimension_numbers<[1], [0], [0], [1], [0, 0, 1, 1], [], []>} : vector<96x128xbf16>, vector<128x128xbf16>, vector<96x128xf32> -> vector<96x128xf32>
    %30 = vector.broadcast %6 : vector<1x128xf32> to vector<96x128xf32>
    %31 = arith.addf %29, %30 : vector<96x128xf32>
    %cst_13 = arith.constant 5.000000e-01 : f32
    %32 = vector.broadcast %cst_13 : f32 to vector<96x128xf32>
    %33 = arith.mulf %32, %31 : vector<96x128xf32>
    %cst_14 = arith.constant 0.707106769 : f32
    %34 = vector.broadcast %cst_14 : f32 to vector<96x128xf32>
    %35 = arith.mulf %31, %34 : vector<96x128xf32>
    %36 = math.erf %35 : vector<96x128xf32>
    %cst_15 = arith.constant 1.000000e+00 : f32
    %37 = vector.broadcast %cst_15 : f32 to vector<96x128xf32>
    %38 = arith.addf %37, %36 : vector<96x128xf32>
    %39 = arith.mulf %33, %38 : vector<96x128xf32>
    %c2_i32 = arith.constant 2 : i32
    %40 = arith.muli %arg1, %c2_i32 : i32
    %41 = arith.addi %40, %arg2 : i32
    %42 = tpu.iota {dimensions = array<i32: 0>} : vector<96x128xi32>
    %c96_i32 = arith.constant 96 : i32
    %43 = arith.muli %41, %c96_i32 : i32
    %44 = vector.broadcast %43 : i32 to vector<96x128xi32>
    %45 = arith.addi %42, %44 : vector<96x128xi32>
    %c256_i32 = arith.constant 256 : i32
    %46 = vector.broadcast %c256_i32 : i32 to vector<96x128xi32>
    %47 = arith.cmpi slt, %45, %46 : vector<96x128xi32>
    %cst_16 = arith.constant 0.000000e+00 : f32
    %48 = vector.broadcast %cst_16 : f32 to vector<96x128xf32>
    %49 = arith.select %47, %39, %48 : vector<96x128xi1>, vector<96x128xf32>
    %c0_17 = arith.constant 0 : index
    %c0_18 = arith.constant 0 : index
    %c0_19 = arith.constant 0 : index
    %50 = vector.load %arg6[%c0_17, %c0_18, %c0_19] : memref<1x1x128xf32, #tpu.memory_space<vmem>>, vector<1x1x128xf32>
    %51 = vector.shape_cast %50 : vector<1x1x128xf32> to vector<1x128xf32>
    %52 = arith.mulf %49, %49 : vector<96x128xf32>
    %cst_20 = arith.constant dense<0.000000e+00> : vector<128xf32>
    %53 = vector.multi_reduction <add>, %52, %cst_20 [0] : vector<96x128xf32> to vector<128xf32>
    %54 = vector.shape_cast %53 : vector<128xf32> to vector<1x128xf32>
    %55 = arith.addf %51, %54 : vector<1x128xf32>
    %c0_21 = arith.constant 0 : index
    %c0_22 = arith.constant 0 : index
    %c0_23 = arith.constant 0 : index
    %56 = vector.load %arg6[%c0_21, %c0_22, %c0_23] : memref<1x1x128xf32, #tpu.memory_space<vmem>>, vector<1x1x128xf32>
    %57 = vector.shape_cast %56 : vector<1x1x128xf32> to vector<1x128xf32>
    %58 = vector.shape_cast %55 : vector<1x128xf32> to vector<1x1x128xf32>
    tpu.vector_store %arg6[%c0_21, %c0_22, %c0_23], %58 {strides = array<i32>} : memref<1x1x128xf32, #tpu.memory_space<vmem>>, vector<1x1x128xf32>,
    return
  }
  func.func @transform_0(%arg0: i32, %arg1: i32, %arg2: i32) -> (i32, i32, i32) {
    %c2_i32 = arith.constant 2 : i32
    %0 = arith.muli %arg1, %c2_i32 : i32
    %1 = arith.addi %0, %arg2 : i32
    %c2_i32_0 = arith.constant 2 : i32
    %2 = arith.minsi %1, %c2_i32_0 : i32
    %c0_i32 = arith.constant 0 : i32
    %c0_i32_1 = arith.constant 0 : i32
    return %arg0, %2, %c0_i32 : i32, i32, i32
  }
  func.func @transform_1(%arg0: i32, %arg1: i32, %arg2: i32) -> (i32, i32) {
    %c0_i32 = arith.constant 0 : i32
    %c0_i32_0 = arith.constant 0 : i32
    %c0_i32_1 = arith.constant 0 : i32
    return %c0_i32, %c0_i32_0 : i32, i32
  }
  func.func @transform_2(%arg0: i32, %arg1: i32, %arg2: i32) -> (i32, i32) {
    %c0_i32 = arith.constant 0 : i32
    %c0_i32_0 = arith.constant 0 : i32
    %c0_i32_1 = arith.constant 0 : i32
    return %c0_i32, %c0_i32_0 : i32, i32
  }
  func.func @transform_3(%arg0: i32, %arg1: i32, %arg2: i32) -> (i32, i32, i32) {
    %c2_i32 = arith.constant 2 : i32
    %0 = arith.muli %arg0, %c2_i32 : i32
    %1 = arith.addi %0, %arg1 : i32
    %c0_i32 = arith.constant 0 : i32
    %c0_i32_0 = arith.constant 0 : i32
    %c0_i32_1 = arith.constant 0 : i32
    return %1, %c0_i32, %c0_i32_0 : i32, i32, i32
  }
}

module attributes {stable_mosaic.version = 11 : i64} {
  func.func @_grn_stats_kernel(%arg0: i32, %arg1: i32, %arg2: i32, %arg3: memref<1x96x128xf32, #tpu.memory_space<vmem>>, %arg4: memref<128x128xbf16, #tpu.memory_space<vmem>>, %arg5: memref<1x128xf32, #tpu.memory_space<vmem>>, %arg6: memref<1x1x128xf32, #tpu.memory_space<vmem>>) attributes {dimension_semantics = [#tpu.dimension_semantics<parallel>, #tpu.dimension_semantics<parallel>, #tpu.dimension_semantics<arbitrary>], iteration_bounds = array<i64: 2, 2, 2>, scalar_prefetch = 0 : i64, scratch_operands = 0 : i64, tpu.core_type = #tpu.core_type<tc>, window_params = [{transform_indices = @transform_0, window_bounds = array<i64: 1, 96, 128>}, {pipeline_mode = #tpu.pipeline_mode<synchronous>, transform_indices = @transform_1, window_bounds = array<i64: 128, 128>}, {pipeline_mode = #tpu.pipeline_mode<synchronous>, transform_indices = @transform_2, window_bounds = array<i64: 1, 128>}, {transform_indices = @transform_3, window_bounds = array<i64: 1, 1, 128>}]} {
    %c0_i32 = arith.constant 0 : i32
    %0 = arith.cmpi eq, %arg2, %c0_i32 : i32
    %1 = arith.extui %0 : i1 to i32
    %c0_i32_0 = arith.constant 0 : i32
    %2 = arith.cmpi ne, %1, %c0_i32_0 : i32
    scf.if %2 {
      %cst_24 = arith.constant 0.000000e+00 : f32
      %59 = vector.broadcast %cst_24 : f32 to vector<1x1x128xf32>
      %c0_25 = arith.constant 0 : index
      %c0_26 = arith.constant 0 : index
      %c0_27 = arith.constant 0 : index
      %60 = vector.load %arg6[%c0_25, %c0_26, %c0_27] : memref<1x1x128xf32, #tpu.memory_space<vmem>>, vector<1x1x128xf32>
      tpu.vector_store %arg6[%c0_25, %c0_26, %c0_27], %59 {strides = array<i32>} : memref<1x1x128xf32, #tpu.memory_space<vmem>>, vector<1x1x128xf32>,
    } else {
    }
    %c0 = arith.constant 0 : index
    %c0_1 = arith.constant 0 : index
    %c0_2 = arith.constant 0 : index
    %3 = vector.load %arg3[%c0, %c0_1, %c0_2] : memref<1x96x128xf32, #tpu.memory_space<vmem>>, vector<1x96x128xf32>
    %4 = vector.shape_cast %3 : vector<1x96x128xf32> to vector<96x128xf32>
    %c0_3 = arith.constant 0 : index
    %c0_4 = arith.constant 0 : index
    %5 = vector.load %arg4[%c0_3, %c0_4] : memref<128x128xbf16, #tpu.memory_space<vmem>>, vector<128x128xbf16>
    %c0_5 = arith.constant 0 : index
    %c0_6 = arith.constant 0 : index
    %6 = vector.load %arg5[%c0_5, %c0_6] : memref<1x128xf32, #tpu.memory_space<vmem>>, vector<1x128xf32>
    %cst = arith.constant dense<0.000000e+00> : vector<96xf32>
    %7 = vector.multi_reduction <add>, %4, %cst [1] : vector<96x128xf32> to vector<96xf32>
    %8 = vector.shape_cast %7 : vector<96xf32> to vector<96x1xf32>
    %cst_7 = arith.constant 2.500000e-01 : f32
    %9 = vector.broadcast %cst_7 : f32 to vector<96x1xf32>
    %10 = arith.mulf %8, %9 : vector<96x1xf32>
    %11 = vector.broadcast %10 : vector<96x1xf32> to vector<96x128xf32>
    %12 = arith.subf %4, %11 : vector<96x128xf32>
    %13 = tpu.iota {dimensions = array<i32: 1>} : vector<96x128xi32>
    %c4_i32 = arith.constant 4 : i32
    %14 = vector.broadcast %c4_i32 : i32 to vector<96x128xi32>
    %15 = arith.cmpi slt, %13, %14 : vector<96x128xi32>
    %cst_8 = arith.constant 0.000000e+00 : f32
    %16 = vector.broadcast %cst_8 : f32 to vector<96x128xf32>
    %17 = arith.select %15, %12, %16 : vector<96x128xi1>, vector<96x128xf32>
    %18 = arith.mulf %17, %17 : vector<96x128xf32>
    %cst_9 = arith.constant dense<0.000000e+00> : vector<96xf32>
    %19 = vector.multi_reduction <add>, %18, %cst_9 [1] : vector<96x128xf32> to vector<96xf32>
    %20 = vector.shape_cast %19 : vector<96xf32> to vector<96x1xf32>
    %cst_10 = arith.constant 2.500000e-01 : f32
    %21 = vector.broadcast %cst_10 : f32 to vector<96x1xf32>
    %22 = arith.mulf %20, %21 : vector<96x1xf32>
    %cst_11 = arith.constant 9.99999997E-7 : f32
    %23 = vector.broadcast %cst_11 : f32 to vector<96x1xf32>
    %24 = arith.addf %22, %23 : vector<96x1xf32>
    %25 = math.rsqrt %24 : vector<96x1xf32>
    %26 = vector.broadcast %25 : vector<96x1xf32> to vector<96x128xf32>
    %27 = arith.mulf %17, %26 : vector<96x128xf32>
    %28 = arith.truncf %27 : vector<96x128xf32> to vector<96x128xbf16>
    %cst_12 = arith.constant dense<0.000000e+00> : vector<96x128xf32>
    %29 = tpu.matmul %28, %5, %cst_12 {dimension_numbers = #tpu.dot_dimension_numbers<[1], [0], [0], [1], [0, 0, 1, 1], [], []>} : vector<96x128xbf16>, vector<128x128xbf16>, vector<96x128xf32> -> vector<96x128xf32>
    %30 = vector.broadcast %6 : vector<1x128xf32> to vector<96x128xf32>
    %31 = arith.addf %29, %30 : vector<96x128xf32>
    %cst_13 = arith.constant 5.000000e-01 : f32
    %32 = vector.broadcast %cst_13 : f32 to vector<96x128xf32>
    %33 = arith.mulf %32, %31 : vector<96x128xf32>
    %cst_14 = arith.constant 0.707106769 : f32
    %34 = vector.broadcast %cst_14 : f32 to vector<96x128xf32>
    %35 = arith.mulf %31, %34 : vector<96x128xf32>
    %36 = math.erf %35 : vector<96x128xf32>
    %cst_15 = arith.constant 1.000000e+00 : f32
    %37 = vector.broadcast %cst_15 : f32 to vector<96x128xf32>
    %38 = arith.addf %37, %36 : vector<96x128xf32>
    %39 = arith.mulf %33, %38 : vector<96x128xf32>
    %c2_i32 = arith.constant 2 : i32
    %40 = arith.muli %arg1, %c2_i32 : i32
    %41 = arith.addi %40, %arg2 : i32
    %42 = tpu.iota {dimensions = array<i32: 0>} : vector<96x128xi32>
    %c96_i32 = arith.constant 96 : i32
    %43 = arith.muli %41, %c96_i32 : i32
    %44 = vector.broadcast %43 : i32 to vector<96x128xi32>
    %45 = arith.addi %42, %44 : vector<96x128xi32>
    %c256_i32 = arith.constant 256 : i32
    %46 = vector.broadcast %c256_i32 : i32 to vector<96x128xi32>
    %47 = arith.cmpi slt, %45, %46 : vector<96x128xi32>
    %cst_16 = arith.constant 0.000000e+00 : f32
    %48 = vector.broadcast %cst_16 : f32 to vector<96x128xf32>
    %49 = arith.select %47, %39, %48 : vector<96x128xi1>, vector<96x128xf32>
    %c0_17 = arith.constant 0 : index
    %c0_18 = arith.constant 0 : index
    %c0_19 = arith.constant 0 : index
    %50 = vector.load %arg6[%c0_17, %c0_18, %c0_19] : memref<1x1x128xf32, #tpu.memory_space<vmem>>, vector<1x1x128xf32>
    %51 = vector.shape_cast %50 : vector<1x1x128xf32> to vector<1x128xf32>
    %52 = arith.mulf %49, %49 : vector<96x128xf32>
    %cst_20 = arith.constant dense<0.000000e+00> : vector<128xf32>
    %53 = vector.multi_reduction <add>, %52, %cst_20 [0] : vector<96x128xf32> to vector<128xf32>
    %54 = vector.shape_cast %53 : vector<128xf32> to vector<1x128xf32>
    %55 = arith.addf %51, %54 : vector<1x128xf32>
    %c0_21 = arith.constant 0 : index
    %c0_22 = arith.constant 0 : index
    %c0_23 = arith.constant 0 : index
    %56 = vector.load %arg6[%c0_21, %c0_22, %c0_23] : memref<1x1x128xf32, #tpu.memory_space<vmem>>, vector<1x1x128xf32>
    %57 = vector.shape_cast %56 : vector<1x1x128xf32> to vector<1x128xf32>
    %58 = vector.shape_cast %55 : vector<1x128xf32> to vector<1x1x128xf32>
    tpu.vector_store %arg6[%c0_21, %c0_22, %c0_23], %58 {strides = array<i32>} : memref<1x1x128xf32, #tpu.memory_space<vmem>>, vector<1x1x128xf32>,
    return
  }
  func.func @transform_0(%arg0: i32, %arg1: i32, %arg2: i32) -> (i32, i32, i32) {
    %c2_i32 = arith.constant 2 : i32
    %0 = arith.muli %arg1, %c2_i32 : i32
    %1 = arith.addi %0, %arg2 : i32
    %c2_i32_0 = arith.constant 2 : i32
    %2 = arith.minsi %1, %c2_i32_0 : i32
    %c0_i32 = arith.constant 0 : i32
    %c0_i32_1 = arith.constant 0 : i32
    return %arg0, %2, %c0_i32 : i32, i32, i32
  }
  func.func @transform_1(%arg0: i32, %arg1: i32, %arg2: i32) -> (i32, i32) {
    %c0_i32 = arith.constant 0 : i32
    %c0_i32_0 = arith.constant 0 : i32
    %c0_i32_1 = arith.constant 0 : i32
    return %c0_i32, %c0_i32_0 : i32, i32
  }
  func.func @transform_2(%arg0: i32, %arg1: i32, %arg2: i32) -> (i32, i32) {
    %c0_i32 = arith.constant 0 : i32
    %c0_i32_0 = arith.constant 0 : i32
    %c0_i32_1 = arith.constant 0 : i32
    return %c0_i32, %c0_i32_0 : i32, i32
  }
  func.func @transform_3(%arg0: i32, %arg1: i32, %arg2: i32) -> (i32, i32, i32) {
    %c2_i32 = arith.constant 2 : i32
    %0 = arith.muli %arg0, %c2_i32 : i32
    %1 = arith.addi %0, %arg1 : i32
    %c0_i32 = arith.constant 0 : i32
    %c0_i32_0 = arith.constant 0 : i32
    %c0_i32_1 = arith.constant 0 : i32
    return %1, %c0_i32, %c0_i32_0 : i32, i32, i32
  }
}

</mosaic_0001>

<llo_original>
// kernel: tpu_custom_call.1
$region0: #{tpu_custom_call.1}
  #allocation0 [shape = 'u32[]', space=smem, size = 0x4, offset = 0x4, fixed_abs, tag = 'smem constant byte address 0x4 - core index']
  #allocation1 [shape = 'u32[144,128]{1,0:T(1,128)}', space=vmem, size = 0x12000, scoped, tag = 'internal scratch']
  %s0 = inlined_call_operand.hbm [shape: f32[2,256,128], index: 0, kind: input, shape index: {}]
  %s1 = inlined_call_operand.hbm [shape: bf16[128,128], index: 1, kind: input, shape index: {}]
  %s2 = inlined_call_operand.vmem [shape: f32[1,128], index: 2, kind: input, shape index: {}]
  %s3 = inlined_call_operand.hbm [shape: f32[4,1,128], index: 3, kind: output, shape index: {}]
  %s4 = sld [smem:[#allocation0]]
  $region57: #{tpu_custom_call.1} parent=0
    _
  %s6 = ssub.s32 1, %s4
  %s7 = scalar_select 0, %s6, %s4
  $region1: #{tpu_custom_call.1} parent=0
    #allocation2 [shape = 'u8[98304]{0}', space=vmem, size = 0x18000, scoped, tag = 'input window, operand 0']
    #allocation3 [shape = 's32[2]{0}', space=sflag, size = 0x8, scoped, tag = 'scoped memory for tpu_custom_call.1']
    #allocation4 [shape = 's32[2]{0}', space=sflag, size = 0x8, scoped, tag = 'scoped memory for tpu_custom_call.1']
    #allocation5 [shape = 'u8[32768]{0}', space=vmem, size = 0x8000, scoped, tag = 'input window, operand 1, single buffered']
    #allocation6 [shape = 's32[1]{0}', space=sflag, size = 0x4, scoped, tag = 'scoped memory for tpu_custom_call.1']
    #allocation7 [shape = 'u8[1024]{0}', space=vmem, size = 0x400, scoped, tag = 'output window, operand 0']
    %8 = vsyncpa [#allocation3], 0
    %s9 = scalar_lea.sflag [#allocation3], 1
    %10 = vsyncpa %s9, 0
    %11 = vsyncpa [#allocation6], 0
    %12 = vsyncpa [#allocation4], 0
    %s13 = scalar_lea.sflag [#allocation4], 1
    %14 = vsyncpa %s13, 0
    loop: start=0, step=1, limit=10
    $region2: #{tpu_custom_call.1} parent=1 // loop_pre_header
      _
    $region3: #{tpu_custom_call.1} parent=1 // loop_header
      %s16 = sphi 0, %s20
      %p17 = scmp.ge.s32.totalorder %s16, 10
      %s23 = sphi 0, %s42
      %s24 = sphi 0, %s38
      %s25 = sphi 0, %s34
      %s26 = sphi 0, %s23
      %s27 = sphi 0, %s24
      %s28 = sphi 0, %s25
      %s29 = sphi 0, %s26
      %s30 = sphi 0, %s27
      %s31 = sphi 0, %s28
      %s55 = sphi 0, %s57
      %s58 = sphi 0, %s55
      %s59 = sphi 0, %s58
      %s75 = sphi 0, %s59
      %s79 = sphi 0, %s79
      %s81 = sphi 0, %s79
      %s82 = sphi 0, %s81
      %s96 = sphi 0, %s82
      %s100 = sphi 0, %s100
      %s102 = sphi 0, %s100
      %s103 = sphi 0, %s102
      %s117 = sphi 0, %s103
      %s127 = sphi 0, %s129
      %s130 = sphi 0, %s127
      %s131 = sphi 0, %s130
      %s147 = sphi 0, %s131
    $region4: #{tpu_custom_call.1} parent=1 // loop_header_branch
      %19 = sbr.rel (%p17) target = $region8
    $region5: #{tpu_custom_call.1} parent=1 // loop_body
      %s21 = ssub.s32 %s16, 1
      %s22 = ssub.s32 %s16, 2
      %s32 = sadd.s32 1, %s25
      %p33 = scmp.ge.s32.totalorder %s32, 2
      %s34 = scalar_select %p33, 0, %s32
      %s35 = sadd.s32 1, %s24
      %s36 = scalar_select %p33, %s35, %s24
      %p37 = scmp.ge.s32.totalorder %s36, 2
      %s38 = scalar_select %p37, 0, %s36
      %s39 = sadd.s32 1, %s23
      %s40 = scalar_select %p37, %s39, %s23
      %p41 = scmp.ge.s32.totalorder %s40, 2
      %s42 = scalar_select %p41, 0, %s40
      %s43 = smul.u32 %s24, 2
      %s44 = sadd.s32 %s43, %s25
      %p45 = scmp.lt.s32.totalorder %s44, 2
      %s46 = scalar_select %p45, %s44, 2
      %s47 = smul.u32 %s38, 2
      %s48 = sadd.s32 %s47, %s34
      %p49 = scmp.lt.s32.totalorder %s48, 2
      %s50 = scalar_select %p49, %s48, 2
      %s51 = ssub.s32 %s23, %s42
      %s52 = ssub.s32 %s46, %s50
      %s53 = sor.u32 %s51, %s52
      %p54 = scmp.eq.s32.totalorder %s53, 0
      %s56 = sadd.s32 %s55, 1
      %s57 = scalar_select %p54, %s55, %s56
      %p60 = pneg %p54
      %p61 = scmp.eq.s32.totalorder %s16, 7
      %p62 = por %p60, %p61
      %p63 = scmp.ne.s32.totalorder %s55, %s58
      %p64 = scmp.eq.s32.totalorder %s16, 0
      %p65 = por %p63, %p64
      %p66 = scmp.ne.s32.totalorder %s55, %s58
      %p67 = scmp.eq.s32.totalorder %s21, 7
      %p68 = por %p66, %p67
      %p69 = scmp.ne.s32.totalorder %s58, %s59
      %p70 = scmp.eq.s32.totalorder %s21, 0
      %p71 = por %p69, %p70
      %p72 = scmp.ne.s32.totalorder %s58, %s59
      %p73 = scmp.eq.s32.totalorder %s22, 7
      %p74 = por %p72, %p73
      %p76 = scmp.ne.s32.totalorder %s59, %s75
      %p77 = scmp.eq.s32.totalorder %s22, 0
      %p78 = por %p76, %p77
      %s80 = sadd.s32 %s79, 1
      %p83 = scmp.eq.s32.totalorder %s16, 7
      %p84 = scmp.ne.s32.totalorder %s79, %s81
      %p85 = scmp.eq.s32.totalorder %s16, 0
      %p86 = por %p84, %p85
      %p87 = scmp.ne.s32.totalorder %s79, %s81
      %p88 = scmp.eq.s32.totalorder %s21, 7
      %p89 = por %p87, %p88
      %p90 = scmp.ne.s32.totalorder %s81, %s82
      %p91 = scmp.eq.s32.totalorder %s21, 0
      %p92 = por %p90, %p91
      %p93 = scmp.ne.s32.totalorder %s81, %s82
      %p94 = scmp.eq.s32.totalorder %s22, 7
      %p95 = por %p93, %p94
      %p97 = scmp.ne.s32.totalorder %s82, %s96
      %p98 = scmp.eq.s32.totalorder %s22, 0
      %p99 = por %p97, %p98
      %s101 = sadd.s32 %s100, 1
      %p104 = scmp.eq.s32.totalorder %s16, 7
      %p105 = scmp.ne.s32.totalorder %s100, %s102
      %p106 = scmp.eq.s32.totalorder %s16, 0
      %p107 = por %p105, %p106
      %p108 = scmp.ne.s32.totalorder %s100, %s102
      %p109 = scmp.eq.s32.totalorder %s21, 7
      %p110 = por %p108, %p109
      %p111 = scmp.ne.s32.totalorder %s102, %s103
      %p112 = scmp.eq.s32.totalorder %s21, 0
      %p113 = por %p111, %p112
      %p114 = scmp.ne.s32.totalorder %s102, %s103
      %p115 = scmp.eq.s32.totalorder %s22, 7
      %p116 = por %p114, %p115
      %p118 = scmp.ne.s32.totalorder %s103, %s117
      %p119 = scmp.eq.s32.totalorder %s22, 0
      %p120 = por %p118, %p119
      %s121 = smul.u32 %s23, 2
      %s122 = sadd.s32 %s121, %s24
      %s123 = smul.u32 %s42, 2
      %s124 = sadd.s32 %s123, %s38
      %s125 = ssub.s32 %s122, %s124
      %p126 = scmp.eq.s32.totalorder %s125, 0
      %s128 = sadd.s32 %s127, 1
      %s129 = scalar_select %p126, %s127, %s128
      %p132 = pneg %p126
      %p133 = scmp.eq.s32.totalorder %s16, 7
      %p134 = por %p132, %p133
      %p135 = scmp.ne.s32.totalorder %s127, %s130
      %p136 = scmp.eq.s32.totalorder %s16, 0
      %p137 = por %p135, %p136
      %p138 = scmp.ne.s32.totalorder %s127, %s130
      %p139 = scmp.eq.s32.totalorder %s21, 7
      %p140 = por %p138, %p139
      %p141 = scmp.ne.s32.totalorder %s130, %s131
      %p142 = scmp.eq.s32.totalorder %s21, 0
      %p143 = por %p141, %p142
      %p144 = scmp.ne.s32.totalorder %s130, %s131
      %p145 = scmp.eq.s32.totalorder %s22, 7
      %p146 = por %p144, %p145
      %p148 = scmp.ne.s32.totalorder %s131, %s147
      %p149 = scmp.eq.s32.totalorder %s22, 0
      %p150 = por %p148, %p149
      %p151 = scmp.le.s32.totalorder 1, %s16
      %p152 = scmp.lt.s32.totalorder %s16, 9
      %p153 = pnand %p151, %p152
      %p154 = pneg %p153
      // Predicated region
      $region9: #{tpu_custom_call.1} parent=5 // pred_check
        _
      $region10: #{tpu_custom_call.1} parent=5 // pred_check_branch
        %156 = sbr.rel (%p153) target = $region12
      $region11: #{tpu_custom_call.1} parent=5 // pred_region
        %s157 = ssub.s32 %s16, 1
        // Predicated region
        $region13: #{tpu_custom_call.1} parent=11 // pred_check
          %p158 = pneg %p92
        $region14: #{tpu_custom_call.1} parent=11 // pred_check_branch
          %160 = sbr.rel (%p158) target = $region16
        $region15: #{tpu_custom_call.1} parent=11 // pred_region
          %s162 = ssub.s32 1024, 1024
          %163 = vsyncadd [#allocation6], %s162
          %s164 = sshll.u32 [#allocation5], 4
          %s165 = int_to_ptr.vmem [resolvable:$true] %s164
          %170 = dma.hbm_to_vmem [thread:$0]  %s1, 1024, %s165, [#allocation6], 64, 64, 4
        $region16: #{tpu_custom_call.1} parent=11 // pred_fallthru
          _
        // Predicated region
        $region17: #{tpu_custom_call.1} parent=11 // pred_check
          %p171 = pneg %p113
        $region18: #{tpu_custom_call.1} parent=11 // pred_check_branch
          %173 = sbr.rel (%p171) target = $region20
        $region19: #{tpu_custom_call.1} parent=11 // pred_region
          _
        $region20: #{tpu_custom_call.1} parent=11 // pred_fallthru
          _
      $region12: #{tpu_custom_call.1} parent=5 // pred_fallthru
        _
      %p174 = scmp.lt.s32.totalorder %s16, 8
      // Predicated region
      $region21: #{tpu_custom_call.1} parent=5 // pred_check
        %p175 = pneg %p174
      $region22: #{tpu_custom_call.1} parent=5 // pred_check_branch
        %177 = sbr.rel (%p175) target = $region24
      $region23: #{tpu_custom_call.1} parent=5 // pred_region
        // Predicated region
        $region25: #{tpu_custom_call.1} parent=23 // pred_check
          %p178 = pneg %p65
        $region26: #{tpu_custom_call.1} parent=23 // pred_check_branch
          %180 = sbr.rel (%p178) target = $region28
        $region27: #{tpu_custom_call.1} parent=23 // pred_region
          %s181 = sand.u32 %s55, 1
          %s182 = scalar_lea.sflag [#allocation3], %s181
          %s183 = sand.u32 %s55, 1
          %s184 = smul.addr %s183, 96
          %s185 = scalar_lea.vmem [#allocation2], %s184
          %s186 = smul.u32 %s24, 2
          %s187 = sadd.s32 %s186, %s25
          %p188 = scmp.lt.s32.totalorder %s187, 2
          %s189 = scalar_select %p188, %s187, 2
          %s190 = smul.u32 12, %s189
          %s191 = ssub.s32 32, %s190
          %p192 = scmp.lt.s32.totalorder %s191, 12
          %s193 = scalar_select %p192, %s191, 12
          %s194 = smul.u32 128, %s193
          %s196 = ssub.s32 1536, %s194
          %197 = vsyncadd %s182, %s196
          %p198 = scmp.ne.s32.totalorder 0, %s194
          %s199 = smul.addr %s23, 32
          %s200 = sadd.s32 %s190, %s199
          %s201 = smul.addr %s200, 128
          %s202 = scalar_lea.hbm %s0, %s201
          %s203 = smul.u32 8, %s193
          %s204 = sshll.u32 %s185, 4
          %s205 = int_to_ptr.vmem [resolvable:$true] %s204
          %s206 = sshll.u32 %s203, 4
          %210 = dma.hbm_to_vmem [thread:$0]  (%p198), %s202, %s206, %s205, %s182, 128, 128, 8
        $region28: #{tpu_custom_call.1} parent=23 // pred_fallthru
          _
      $region24: #{tpu_custom_call.1} parent=5 // pred_fallthru
        _
      %p211 = scmp.le.s32.totalorder 1, %s16
      %p212 = scmp.lt.s32.totalorder %s16, 9
      %p213 = pnand %p211, %p212
      %p214 = pneg %p213
      // Predicated region
      $region29: #{tpu_custom_call.1} parent=5 // pred_check
        _
      $region30: #{tpu_custom_call.1} parent=5 // pred_check_branch
        %216 = sbr.rel (%p213) target = $region32
      $region31: #{tpu_custom_call.1} parent=5 // pred_region
        %s217 = ssub.s32 %s16, 1
        %s218 = sand.u32 %s58, 1
        %s219 = scalar_lea.sflag [#allocation3], %s218
        %s220 = sand.u32 %s58, 1
        %s221 = smul.addr %s220, 96
        %s222 = scalar_lea.vmem [#allocation2], %s221
        // Predicated region
        $region33: #{tpu_custom_call.1} parent=31 // pred_check
          %p223 = pneg %p71
        $region34: #{tpu_custom_call.1} parent=31 // pred_check_branch
          %225 = sbr.rel (%p223) target = $region36
        $region35: #{tpu_custom_call.1} parent=31 // pred_region
          %226 = dma.done %s219, 1536
        $region36: #{tpu_custom_call.1} parent=31 // pred_fallthru
          _
        // Predicated region
        $region37: #{tpu_custom_call.1} parent=31 // pred_check
          %p227 = pneg %p92
        $region38: #{tpu_custom_call.1} parent=31 // pred_check_branch
          %229 = sbr.rel (%p227) target = $region40
        $region39: #{tpu_custom_call.1} parent=31 // pred_region
          %230 = dma.done [#allocation6], 1024
        $region40: #{tpu_custom_call.1} parent=31 // pred_fallthru
          _
        %s231 = sand.u32 %s58, 1
        %s232 = scalar_lea.sflag [#allocation3], %s231
        %s233 = sand.u32 %s58, 1
        %s234 = smul.addr %s233, 96
        %s235 = scalar_lea.vmem [#allocation2], %s234
        %p236 = pneg %p71
        %p237 = pneg %p68
        %p238 = pneg %p92
        %p239 = pneg %p89
        %p240 = pneg %p113
        %p241 = pneg %p110
        %p242 = pneg %p143
        %p243 = pneg %p140
        %s244 = sand.u32 %s130, 1
        %s245 = scalar_lea.sflag [#allocation4], %s244
        %s246 = sand.u32 %s130, 1
        %s247 = scalar_lea.vmem [#allocation7], %s246
        %s248 = smul.u32 %s27, 2
        %s249 = sadd.s32 %s248, %s28
        %p250 = scmp.lt.s32.totalorder %s249, 2
        %s251 = scalar_select %p250, %s249, 2
        %s252 = smul.u32 12, %s251
        %s253 = ssub.s32 32, %s252
        %p254 = scmp.lt.s32.totalorder %s253, 12
        %s255 = scalar_select %p254, %s253, 12
        %s256 = smul.u32 128, %s255
        %s257 = smul.u32 %s26, 2
        %s258 = sadd.s32 %s257, %s27
        %p260 = scmp.eq.s32.totalorder %s28, 0
        // Predicated region
        $region41: #{tpu_custom_call.1} parent=31 // pred_check
          %p261 = pneg %p260
        $region42: #{tpu_custom_call.1} parent=31 // pred_check_branch
          %263 = sbr.rel (%p261) target = $region44
        $region43: #{tpu_custom_call.1} parent=31 // pred_region
          %264 = vst [vmem:[%s247] sm:$0x1] 0.0
        $region44: #{tpu_custom_call.1} parent=31 // pred_fallthru
          _
        %v265 = vld [vmem:[%s222] sm:$0xff]
        %v266 = vld [vmem:[%s222 + $0x8] sm:$0xff]
        %v267 = vld [vmem:[%s222 + $0x10] sm:$0xff]
        %v268 = vld [vmem:[%s222 + $0x18] sm:$0xff]
        %v269 = vld [vmem:[%s222 + $0x20] sm:$0xff]
        %v270 = vld [vmem:[%s222 + $0x28] sm:$0xff]
        %v271 = vld [vmem:[%s222 + $0x30] sm:$0xff]
        %v272 = vld [vmem:[%s222 + $0x38] sm:$0xff]
        %v273 = vld [vmem:[%s222 + $0x40] sm:$0xff]
        %v274 = vld [vmem:[%s222 + $0x48] sm:$0xff]
        %v275 = vld [vmem:[%s222 + $0x50] sm:$0xff]
        %v276 = vld [vmem:[%s222 + $0x58] sm:$0xff]
        %v277 = vld [vmem:[#allocation5] sm:$0xf]
        %v278 = vld [vmem:[#allocation5 + $0x4] sm:$0xf]
        %v279 = vld [vmem:[#allocation5 + $0x8] sm:$0xf]
        %v280 = vld [vmem:[#allocation5 + $0xc] sm:$0xf]
        %v281 = vld [vmem:[#allocation5 + $0x10] sm:$0xf]
        %v282 = vld [vmem:[#allocation5 + $0x14] sm:$0xf]
        %v283 = vld [vmem:[#allocation5 + $0x18] sm:$0xf]
        %v284 = vld [vmem:[#allocation5 + $0x1c] sm:$0xf]
        %v285 = vld [vmem:[#allocation5 + $0x20] sm:$0xf]
        %v286 = vld [vmem:[#allocation5 + $0x24] sm:$0xf]
        %v287 = vld [vmem:[#allocation5 + $0x28] sm:$0xf]
        %v288 = vld [vmem:[#allocation5 + $0x2c] sm:$0xf]
        %v289 = vld [vmem:[#allocation5 + $0x30] sm:$0xf]
        %v290 = vld [vmem:[#allocation5 + $0x34] sm:$0xf]
        %v291 = vld [vmem:[#allocation5 + $0x38] sm:$0xf]
        %v292 = vld [vmem:[#allocation5 + $0x3c] sm:$0xf]
        %v293 = vld [vmem:[%s2] sm:$0x1]
        %294 = vadd.xlane.f32.xlu0 %v265
        %v295 = vpop.xlane.xlu0 %294
        %296 = vadd.xlane.f32.xlu0 %v266
        %v297 = vpop.xlane.xlu0 %296
        %298 = vadd.xlane.f32.xlu0 %v267
        %v299 = vpop.xlane.xlu0 %298
        %300 = vadd.xlane.f32.xlu0 %v268
        %v301 = vpop.xlane.xlu0 %300
        %302 = vadd.xlane.f32.xlu0 %v269
        %v303 = vpop.xlane.xlu0 %302
        %304 = vadd.xlane.f32.xlu0 %v270
        %v305 = vpop.xlane.xlu0 %304
        %306 = vadd.xlane.f32.xlu0 %v271
        %v307 = vpop.xlane.xlu0 %306
        %308 = vadd.xlane.f32.xlu0 %v272
        %v309 = vpop.xlane.xlu0 %308
        %310 = vadd.xlane.f32.xlu0 %v273
        %v311 = vpop.xlane.xlu0 %310
        %312 = vadd.xlane.f32.xlu0 %v274
        %v313 = vpop.xlane.xlu0 %312
        %314 = vadd.xlane.f32.xlu0 %v275
        %v315 = vpop.xlane.xlu0 %314
        %316 = vadd.xlane.f32.xlu0 %v276
        %v317 = vpop.xlane.xlu0 %316
        %v318 = vmul.f32 %v295, 0.25
        %v319 = vmul.f32 %v297, 0.25
        %v320 = vmul.f32 %v299, 0.25
        %v321 = vmul.f32 %v301, 0.25
        %v322 = vmul.f32 %v303, 0.25
        %v323 = vmul.f32 %v305, 0.25
        %v324 = vmul.f32 %v307, 0.25
        %v325 = vmul.f32 %v309, 0.25
        %v326 = vmul.f32 %v311, 0.25
        %v327 = vmul.f32 %v313, 0.25
        %v328 = vmul.f32 %v315, 0.25
        %v329 = vmul.f32 %v317, 0.25
        %v330 = vsub.f32 %v265, %v318
        %v331 = vsub.f32 %v266, %v319
        %v332 = vsub.f32 %v267, %v320
        %v333 = vsub.f32 %v268, %v321
        %v334 = vsub.f32 %v269, %v322
        %v335 = vsub.f32 %v270, %v323
        %v336 = vsub.f32 %v271, %v324
        %v337 = vsub.f32 %v272, %v325
        %v338 = vsub.f32 %v273, %v326
        %v339 = vsub.f32 %v274, %v327
        %v340 = vsub.f32 %v275, %v328
        %v341 = vsub.f32 %v276, %v329
        %v342 = vlaneseq
        %v343 = vand.u32 %v342, 127
        %vm344 = vcmp.lt.s32.totalorder %v343, 4
        %v345 = vsel %vm344, %v330, 0.0
        %v346 = vsel %vm344, %v331, 0.0
        %v347 = vsel %vm344, %v332, 0.0
        %v348 = vsel %vm344, %v333, 0.0
        %v349 = vsel %vm344, %v334, 0.0
        %v350 = vsel %vm344, %v335, 0.0
        %v351 = vsel %vm344, %v336, 0.0
        %v352 = vsel %vm344, %v337, 0.0
        %v353 = vsel %vm344, %v338, 0.0
        %v354 = vsel %vm344, %v339, 0.0
        %v355 = vsel %vm344, %v340, 0.0
        %v356 = vsel %vm344, %v341, 0.0
        %v357 = vmul.f32 %v345, %v345
        %v358 = vmul.f32 %v346, %v346
        %v359 = vmul.f32 %v347, %v347
        %v360 = vmul.f32 %v348, %v348
        %v361 = vmul.f32 %v349, %v349
        %v362 = vmul.f32 %v350, %v350
        %v363 = vmul.f32 %v351, %v351
        %v364 = vmul.f32 %v352, %v352
        %v365 = vmul.f32 %v353, %v353
        %v366 = vmul.f32 %v354, %v354
        %v367 = vmul.f32 %v355, %v355
        %v368 = vmul.f32 %v356, %v356
        %369 = vadd.xlane.f32.xlu0 %v357
        %v370 = vpop.xlane.xlu0 %369
        %371 = vadd.xlane.f32.xlu0 %v358
        %v372 = vpop.xlane.xlu0 %371
        %373 = vadd.xlane.f32.xlu0 %v359
        %v374 = vpop.xlane.xlu0 %373
        %375 = vadd.xlane.f32.xlu0 %v360
        %v376 = vpop.xlane.xlu0 %375
        %377 = vadd.xlane.f32.xlu0 %v361
        %v378 = vpop.xlane.xlu0 %377
        %379 = vadd.xlane.f32.xlu0 %v362
        %v380 = vpop.xlane.xlu0 %379
        %381 = vadd.xlane.f32.xlu0 %v363
        %v382 = vpop.xlane.xlu0 %381
        %383 = vadd.xlane.f32.xlu0 %v364
        %v384 = vpop.xlane.xlu0 %383
        %385 = vadd.xlane.f32.xlu0 %v365
        %v386 = vpop.xlane.xlu0 %385
        %387 = vadd.xlane.f32.xlu0 %v366
        %v388 = vpop.xlane.xlu0 %387
        %389 = vadd.xlane.f32.xlu0 %v367
        %v390 = vpop.xlane.xlu0 %389
        %391 = vadd.xlane.f32.xlu0 %v368
        %v392 = vpop.xlane.xlu0 %391
        %v393 = vmul.f32 %v370, 0.25
        %v394 = vmul.f32 %v372, 0.25
        %v395 = vmul.f32 %v374, 0.25
        %v396 = vmul.f32 %v376, 0.25
        %v397 = vmul.f32 %v378, 0.25
        %v398 = vmul.f32 %v380, 0.25
        %v399 = vmul.f32 %v382, 0.25
        %v400 = vmul.f32 %v384, 0.25
        %v401 = vmul.f32 %v386, 0.25
        %v402 = vmul.f32 %v388, 0.25
        %v403 = vmul.f32 %v390, 0.25
        %v404 = vmul.f32 %v392, 0.25
        %v405 = vadd.f32 %v393, 1e-06
        %v406 = vadd.f32 %v394, 1e-06
        %v407 = vadd.f32 %v395, 1e-06
        %v408 = vadd.f32 %v396, 1e-06
        %v409 = vadd.f32 %v397, 1e-06
        %v410 = vadd.f32 %v398, 1e-06
        %v411 = vadd.f32 %v399, 1e-06
        %v412 = vadd.f32 %v400, 1e-06
        %v413 = vadd.f32 %v401, 1e-06
        %v414 = vadd.f32 %v402, 1e-06
        %v415 = vadd.f32 %v403, 1e-06
        %v416 = vadd.f32 %v404, 1e-06
        %v417 = vrsqrt.pop %v405
        %v418 = vrsqrt.pop %v406
        %v419 = vrsqrt.pop %v407
        %v420 = vrsqrt.pop %v408
        %v421 = vrsqrt.pop %v409
        %v422 = vrsqrt.pop %v410
        %v423 = vrsqrt.pop %v411
        %v424 = vrsqrt.pop %v412
        %v425 = vrsqrt.pop %v413
        %v426 = vrsqrt.pop %v414
        %v427 = vrsqrt.pop %v415
        %v428 = vrsqrt.pop %v416
        %v429 = vmul.f32 %v345, %v417
        %v430 = vmul.f32 %v346, %v418
        %v431 = vmul.f32 %v347, %v419
        %v432 = vmul.f32 %v348, %v420
        %v433 = vmul.f32 %v349, %v421
        %v434 = vmul.f32 %v350, %v422
        %v435 = vmul.f32 %v351, %v423
        %v436 = vmul.f32 %v352, %v424
        %v437 = vmul.f32 %v353, %v425
        %v438 = vmul.f32 %v354, %v426
        %v439 = vmul.f32 %v355, %v427
        %v440 = vmul.f32 %v356, %v428
        %v441 = vpack.c.bf16 %v430, %v429
        %v442 = vpack.c.bf16 %v432, %v431
        %v443 = vpack.c.bf16 %v434, %v433
        %v444 = vpack.c.bf16 %v436, %v435
        %v445 = vpack.c.bf16 %v438, %v437
        %v446 = vpack.c.bf16 %v440, %v439
        %v448 = vlaneseq
        %v449 = vshrl.u32 %v448, 7
        %v450 = vsub.s32 0, %v449
        %v451 = vrot.slane %v293, %v450
        %v469 = vunpack.c.l.b16 %v277
        %v470 = vunpack.c.l.b16 %v278
        %v471 = vunpack.c.l.b16 %v279
        %v472 = vunpack.c.l.b16 %v280
        %v473 = vunpack.c.l.b16 %v281
        %v474 = vunpack.c.l.b16 %v282
        %v475 = vunpack.c.l.b16 %v283
        %v476 = vunpack.c.l.b16 %v284
        %v477 = vunpack.c.l.b16 %v285
        %v478 = vunpack.c.l.b16 %v286
        %v479 = vunpack.c.l.b16 %v287
        %v480 = vunpack.c.l.b16 %v288
        %v481 = vunpack.c.l.b16 %v289
        %v482 = vunpack.c.l.b16 %v290
        %v483 = vunpack.c.l.b16 %v291
        %v484 = vunpack.c.l.b16 %v292
        %v485 = vpack.c.b16 %v470, %v469
        %v486 = vpack.c.b16 %v472, %v471
        %v487 = vpack.c.b16 %v474, %v473
        %v488 = vpack.c.b16 %v476, %v475
        %v489 = vpack.c.b16 %v478, %v477
        %v490 = vpack.c.b16 %v480, %v479
        %v491 = vpack.c.b16 %v482, %v481
        %v492 = vpack.c.b16 %v484, %v483
        %501 = vmatprep.subr.bf16.mxu0 0
        %502 = vmatpush1.bf16.msra.mxu0 %v492
        %503 = vmatprep.subr.bf16.mxu0 0
        %504 = vmatpush1.bf16.msra.mxu0 %v491
        %505 = vmatprep.subr.bf16.mxu0 0
        %506 = vmatpush1.bf16.msra.mxu0 %v490
        %507 = vmatprep.subr.bf16.mxu0 0
        %508 = vmatpush1.bf16.msra.mxu0 %v489
        %509 = vmatprep.subr.bf16.mxu0 0
        %510 = vmatpush1.bf16.msra.mxu0 %v488
        %511 = vmatprep.subr.bf16.mxu0 0
        %512 = vmatpush1.bf16.msra.mxu0 %v487
        %513 = vmatprep.subr.bf16.mxu0 0
        %514 = vmatpush1.bf16.msra.mxu0 %v486
        %515 = vmatprep.subr.bf16.mxu0 0
        %516 = vmatpush1.bf16.msra.mxu0 %v485
        %517 = vmatprep.subr.bf16.mxu0 0
        %518 = vmatpush2.bf16.msra.mxu0 0
        %519 = vmatprep.subr.bf16.mxu0 0
        %520 = vmatpush2.bf16.msra.mxu0 0
        %521 = vmatprep.subr.bf16.mxu0 0
        %522 = vmatpush2.bf16.msra.mxu0 0
        %523 = vmatprep.subr.bf16.mxu0 0
        %524 = vmatpush2.bf16.msra.mxu0 0
        %525 = vmatprep.subr.bf16.mxu0 0
        %526 = vmatpush2.bf16.msra.mxu0 0
        %527 = vmatprep.subr.bf16.mxu0 0
        %528 = vmatpush2.bf16.msra.mxu0 0
        %529 = vmatprep.subr.bf16.mxu0 0
        %530 = vmatpush2.bf16.msra.mxu0 0
        %531 = vmatprep.subr.bf16.mxu0 0
        %532 = vmatpush2.bf16.msra.mxu0 0
        %533 = vmatprep.mubr.bf16.mxu0 0
        %534 = vmatmul.mubr.bf16.gmra.mxu0 %v441
        %v535 = vpop.f32.mrf.mxu0
        %v536 = vadd.f32 %v451, %v535
        %v537 = vpop.f32.mrf.mxu0
        %v538 = vpop.f32.mrf.mxu0
        %v539 = vadd.f32 %v451, %v538
        %v540 = vpop.f32.mrf.mxu0
        %541 = vmatprep.mubr.bf16.mxu0 0
        %542 = vmatmul.mubr.bf16.gmra.mxu0 %v442
        %v543 = vpop.f32.mrf.mxu0
        %v544 = vadd.f32 %v451, %v543
        %v545 = vpop.f32.mrf.mxu0
        %v546 = vpop.f32.mrf.mxu0
        %v547 = vadd.f32 %v451, %v546
        %v548 = vpop.f32.mrf.mxu0
        %549 = vmatprep.mubr.bf16.mxu0 0
        %550 = vmatmul.mubr.bf16.gmra.mxu0 %v443
        %v551 = vpop.f32.mrf.mxu0
        %v552 = vadd.f32 %v451, %v551
        %v553 = vpop.f32.mrf.mxu0
        %v554 = vpop.f32.mrf.mxu0
        %v555 = vadd.f32 %v451, %v554
        %v556 = vpop.f32.mrf.mxu0
        %557 = vmatprep.mubr.bf16.mxu0 0
        %558 = vmatmul.mubr.bf16.gmra.mxu0 %v444
        %v559 = vpop.f32.mrf.mxu0
        %v560 = vadd.f32 %v451, %v559
        %v561 = vpop.f32.mrf.mxu0
        %v562 = vpop.f32.mrf.mxu0
        %v563 = vadd.f32 %v451, %v562
        %v564 = vpop.f32.mrf.mxu0
        %565 = vmatprep.mubr.bf16.mxu0 0
        %566 = vmatmul.mubr.bf16.gmra.mxu0 %v445
        %v567 = vpop.f32.mrf.mxu0
        %v568 = vadd.f32 %v451, %v567
        %v569 = vpop.f32.mrf.mxu0
        %v570 = vpop.f32.mrf.mxu0
        %v571 = vadd.f32 %v451, %v570
        %v572 = vpop.f32.mrf.mxu0
        %573 = vmatprep.mubr.bf16.mxu0 0
        %574 = vmatmul.mubr.bf16.gmra.mxu0 %v446
        %v575 = vpop.f32.mrf.mxu0
        %v576 = vadd.f32 %v451, %v575
        %v577 = vpop.f32.mrf.mxu0
        %v578 = vpop.f32.mrf.mxu0
        %v579 = vadd.f32 %v451, %v578
        %v580 = vpop.f32.mrf.mxu0
        %581 = vdwg.mxu0
        %v582 = vmul.f32 %v536, 0.5
        %v583 = vmul.f32 %v539, 0.5
        %v584 = vmul.f32 %v544, 0.5
        %v585 = vmul.f32 %v547, 0.5
        %v586 = vmul.f32 %v552, 0.5
        %v587 = vmul.f32 %v555, 0.5
        %v588 = vmul.f32 %v560, 0.5
        %v589 = vmul.f32 %v563, 0.5
        %v590 = vmul.f32 %v568, 0.5
        %v591 = vmul.f32 %v571, 0.5
        %v592 = vmul.f32 %v576, 0.5
        %v593 = vmul.f32 %v579, 0.5
        %v594 = vmul.f32 %v536, 0.70710677
        %v595 = vmul.f32 %v539, 0.70710677
        %v596 = vmul.f32 %v544, 0.70710677
        %v597 = vmul.f32 %v547, 0.70710677
        %v598 = vmul.f32 %v552, 0.70710677
        %v599 = vmul.f32 %v555, 0.70710677
        %v600 = vmul.f32 %v560, 0.70710677
        %v601 = vmul.f32 %v563, 0.70710677
        %v602 = vmul.f32 %v568, 0.70710677
        %v603 = vmul.f32 %v571, 0.70710677
        %v604 = vmul.f32 %v576, 0.70710677
        %v605 = vmul.f32 %v579, 0.70710677
        %v606 = verf.f32.pop %v594
        %v607 = verf.f32.pop %v595
        %v608 = verf.f32.pop %v596
        %v609 = verf.f32.pop %v597
        %v610 = verf.f32.pop %v598
        %v611 = verf.f32.pop %v599
        %v612 = verf.f32.pop %v600
        %v613 = verf.f32.pop %v601
        %v614 = verf.f32.pop %v602
        %v615 = verf.f32.pop %v603
        %v616 = verf.f32.pop %v604
        %v617 = verf.f32.pop %v605
        %v618 = vadd.f32 %v606, 1.0
        %v619 = vadd.f32 %v607, 1.0
        %v620 = vadd.f32 %v608, 1.0
        %v621 = vadd.f32 %v609, 1.0
        %v622 = vadd.f32 %v610, 1.0
        %v623 = vadd.f32 %v611, 1.0
        %v624 = vadd.f32 %v612, 1.0
        %v625 = vadd.f32 %v613, 1.0
        %v626 = vadd.f32 %v614, 1.0
        %v627 = vadd.f32 %v615, 1.0
        %v628 = vadd.f32 %v616, 1.0
        %v629 = vadd.f32 %v617, 1.0
        %v630 = vmul.f32 %v582, %v618
        %v631 = vmul.f32 %v583, %v619
        %v632 = vmul.f32 %v584, %v620
        %v633 = vmul.f32 %v585, %v621
        %v634 = vmul.f32 %v586, %v622
        %v635 = vmul.f32 %v587, %v623
        %v636 = vmul.f32 %v588, %v624
        %v637 = vmul.f32 %v589, %v625
        %v638 = vmul.f32 %v590, %v626
        %v639 = vmul.f32 %v591, %v627
        %v640 = vmul.f32 %v592, %v628
        %v641 = vmul.f32 %v593, %v629
        %s642 = smul.u32 %s27, 2
        %s643 = sadd.s32 %s642, %s28
        %v644 = vlaneseq
        %v645 = vshrl.u32 %v644, 7
        %v646 = vadd.s32 %v645, 8
        %v647 = vadd.s32 %v645, 16
        %v648 = vadd.s32 %v645, 24
        %v649 = vadd.s32 %v645, 32
        %v650 = vadd.s32 %v645, 40
        %v651 = vadd.s32 %v645, 48
        %v652 = vadd.s32 %v645, 56
        %v653 = vadd.s32 %v645, 64
        %v654 = vadd.s32 %v645, 72
        %v655 = vadd.s32 %v645, 80
        %v656 = vadd.s32 %v645, 88
        %s657 = smul.u32 %s643, 96
        %v658 = vstv %s657
        %v659 = vadd.s32 %v645, %v658
        %v660 = vadd.s32 %v646, %v658
        %v661 = vadd.s32 %v647, %v658
        %v662 = vadd.s32 %v648, %v658
        %v663 = vadd.s32 %v649, %v658
        %v664 = vadd.s32 %v650, %v658
        %v665 = vadd.s32 %v651, %v658
        %v666 = vadd.s32 %v652, %v658
        %v667 = vadd.s32 %v653, %v658
        %v668 = vadd.s32 %v654, %v658
        %v669 = vadd.s32 %v655, %v658
        %v670 = vadd.s32 %v656, %v658
        %vm671 = vcmp.lt.s32.totalorder %v659, 256
        %vm672 = vcmp.lt.s32.totalorder %v660, 256
        %vm673 = vcmp.lt.s32.totalorder %v661, 256
        %vm674 = vcmp.lt.s32.totalorder %v662, 256
        %vm675 = vcmp.lt.s32.totalorder %v663, 256
        %vm676 = vcmp.lt.s32.totalorder %v664, 256
        %vm677 = vcmp.lt.s32.totalorder %v665, 256
        %vm678 = vcmp.lt.s32.totalorder %v666, 256
        %vm679 = vcmp.lt.s32.totalorder %v667, 256
        %vm680 = vcmp.lt.s32.totalorder %v668, 256
        %vm681 = vcmp.lt.s32.totalorder %v669, 256
        %vm682 = vcmp.lt.s32.totalorder %v670, 256
        %v683 = vsel %vm671, %v630, 0.0
        %v684 = vsel %vm672, %v631, 0.0
        %v685 = vsel %vm673, %v632, 0.0
        %v686 = vsel %vm674, %v633, 0.0
        %v687 = vsel %vm675, %v634, 0.0
        %v688 = vsel %vm676, %v635, 0.0
        %v689 = vsel %vm677, %v636, 0.0
        %v690 = vsel %vm678, %v637, 0.0
        %v691 = vsel %vm679, %v638, 0.0
        %v692 = vsel %vm680, %v639, 0.0
        %v693 = vsel %vm681, %v640, 0.0
        %v694 = vsel %vm682, %v641, 0.0
        %v695 = vld [vmem:[%s247] sm:$0x1]
        %v696 = vmul.f32 %v683, %v683
        %v697 = vmul.f32 %v684, %v684
        %v698 = vmul.f32 %v685, %v685
        %v699 = vmul.f32 %v686, %v686
        %v700 = vmul.f32 %v687, %v687
        %v701 = vmul.f32 %v688, %v688
        %v702 = vmul.f32 %v689, %v689
        %v703 = vmul.f32 %v690, %v690
        %v704 = vmul.f32 %v691, %v691
        %v705 = vmul.f32 %v692, %v692
        %v706 = vmul.f32 %v693, %v693
        %v707 = vmul.f32 %v694, %v694
        %v708 = vadd.f32 %v696, %v697
        %v709 = vadd.f32 %v708, %v698
        %v710 = vadd.f32 %v709, %v699
        %v711 = vadd.f32 %v710, %v700
        %v712 = vadd.f32 %v711, %v701
        %v713 = vadd.f32 %v712, %v702
        %v714 = vadd.f32 %v713, %v703
        %v715 = vadd.f32 %v714, %v704
        %v716 = vadd.f32 %v715, %v705
        %v717 = vadd.f32 %v716, %v706
        %v718 = vadd.f32 %v717, %v707
        %v719 = vrot.slane %v718, 4
        %v720 = vadd.f32 %v718, %v719
        %v721 = vrot.slane %v720, 2
        %v722 = vadd.f32 %v720, %v721
        %v723 = vrot.slane %v722, 1
        %v724 = vadd.f32 %v722, %v723
        %v725 = vadd.f32 %v695, %v724
        %726 = vst [vmem:[%s247] sm:$0x1] %v725
        %s727 = sand.u32 %s130, 1
        %s728 = scalar_lea.sflag [#allocation4], %s727
        %s729 = sand.u32 %s130, 1
        %s730 = scalar_lea.vmem [#allocation7], %s729
        // Predicated region
        $region45: #{tpu_custom_call.1} parent=31 // pred_check
          %p731 = pneg %p140
        $region46: #{tpu_custom_call.1} parent=31 // pred_check_branch
          %733 = sbr.rel (%p731) target = $region48
        $region47: #{tpu_custom_call.1} parent=31 // pred_region
          %s734 = smul.u32 %s26, 2
          %s735 = sadd.s32 %s734, %s27
          %s737 = ssub.s32 16, 16
          %738 = vsyncadd %s728, %s737
          %s739 = smul.addr %s735, 16
          %s740 = scalar_lea.hbm %s3, %s739
          %s742 = sshll.u32 %s730, 4
          %s743 = int_to_ptr.vmem [resolvable:$true] %s742
          %745 = dma.vmem_to_hbm [thread:$0]  %s743, 16, %s740, %s728
        $region48: #{tpu_custom_call.1} parent=31 // pred_fallthru
          _
      $region32: #{tpu_custom_call.1} parent=5 // pred_fallthru
        _
      %p746 = scmp.le.s32.totalorder 2, %s16
      // Predicated region
      $region49: #{tpu_custom_call.1} parent=5 // pred_check
        %p747 = pneg %p746
      $region50: #{tpu_custom_call.1} parent=5 // pred_check_branch
        %749 = sbr.rel (%p747) target = $region52
      $region51: #{tpu_custom_call.1} parent=5 // pred_region
        %s750 = ssub.s32 %s16, 2
        // Predicated region
        $region53: #{tpu_custom_call.1} parent=51 // pred_check
          %p751 = pneg %p146
        $region54: #{tpu_custom_call.1} parent=51 // pred_check_branch
          %753 = sbr.rel (%p751) target = $region56
        $region55: #{tpu_custom_call.1} parent=51 // pred_region
          %s754 = sand.u32 %s131, 1
          %s755 = scalar_lea.sflag [#allocation4], %s754
          %s756 = sand.u32 %s131, 1
          %s757 = scalar_lea.vmem [#allocation7], %s756
          %758 = dma.done %s755, 16
        $region56: #{tpu_custom_call.1} parent=51 // pred_fallthru
          _
      $region52: #{tpu_custom_call.1} parent=5 // pred_fallthru
        _
    $region6: #{tpu_custom_call.1} parent=1 // loop_footer
      %s20 = sadd.s32 1, %s16
    $region7: #{tpu_custom_call.1} parent=1 // loop_footer_branch
      %15 = sbr.rel target = $region3
    $region8: #{tpu_custom_call.1} parent=1 // loop_exit
      _
    %759 = vsyncpa [#allocation3], 1
    %s760 = scalar_lea.sflag [#allocation3], 1
    %761 = vsyncpa %s760, 1
    %762 = vsyncpa [#allocation6], 1
    %763 = vsyncpa [#allocation4], 1
    %s764 = scalar_lea.sflag [#allocation4], 1
    %765 = vsyncpa %s764, 1

// kernel: tpu_custom_call.1
$region0: #{tpu_custom_call.1}
  #allocation0 [shape = 'u32[]', space=smem, size = 0x4, offset = 0x4, fixed_abs, tag = 'smem constant byte address 0x4 - core index']
  #allocation1 [shape = 'u32[144,128]{1,0:T(1,128)}', space=vmem, size = 0x12000, scoped, tag = 'internal scratch']
  %s0 = inlined_call_operand.hbm [shape: f32[2,256,128], index: 0, kind: input, shape index: {}]
  %s1 = inlined_call_operand.hbm [shape: bf16[128,128], index: 1, kind: input, shape index: {}]
  %s2 = inlined_call_operand.vmem [shape: f32[1,128], index: 2, kind: input, shape index: {}]
  %s3 = inlined_call_operand.hbm [shape: f32[4,1,128], index: 3, kind: output, shape index: {}]
  %s4 = sld [smem:[#allocation0]]
  $region57: #{tpu_custom_call.1} parent=0
    _
  %s6 = ssub.s32 1, %s4
  %s7 = scalar_select 0, %s6, %s4
  $region1: #{tpu_custom_call.1} parent=0
    #allocation2 [shape = 'u8[98304]{0}', space=vmem, size = 0x18000, scoped, tag = 'input window, operand 0']
    #allocation3 [shape = 's32[2]{0}', space=sflag, size = 0x8, scoped, tag = 'scoped memory for tpu_custom_call.1']
    #allocation4 [shape = 's32[2]{0}', space=sflag, size = 0x8, scoped, tag = 'scoped memory for tpu_custom_call.1']
    #allocation5 [shape = 'u8[32768]{0}', space=vmem, size = 0x8000, scoped, tag = 'input window, operand 1, single buffered']
    #allocation6 [shape = 's32[1]{0}', space=sflag, size = 0x4, scoped, tag = 'scoped memory for tpu_custom_call.1']
    #allocation7 [shape = 'u8[1024]{0}', space=vmem, size = 0x400, scoped, tag = 'output window, operand 0']
    %8 = vsyncpa [#allocation3], 0
    %s9 = scalar_lea.sflag [#allocation3], 1
    %10 = vsyncpa %s9, 0
    %11 = vsyncpa [#allocation6], 0
    %12 = vsyncpa [#allocation4], 0
    %s13 = scalar_lea.sflag [#allocation4], 1
    %14 = vsyncpa %s13, 0
    loop: start=0, step=1, limit=10
    $region2: #{tpu_custom_call.1} parent=1 // loop_pre_header
      _
    $region3: #{tpu_custom_call.1} parent=1 // loop_header
      %s16 = sphi 0, %s20
      %p17 = scmp.ge.s32.totalorder %s16, 10
      %s23 = sphi 0, %s42
      %s24 = sphi 0, %s38
      %s25 = sphi 0, %s34
      %s26 = sphi 0, %s23
      %s27 = sphi 0, %s24
      %s28 = sphi 0, %s25
      %s29 = sphi 0, %s26
      %s30 = sphi 0, %s27
      %s31 = sphi 0, %s28
      %s55 = sphi 0, %s57
      %s58 = sphi 0, %s55
      %s59 = sphi 0, %s58
      %s75 = sphi 0, %s59
      %s79 = sphi 0, %s79
      %s81 = sphi 0, %s79
      %s82 = sphi 0, %s81
      %s96 = sphi 0, %s82
      %s100 = sphi 0, %s100
      %s102 = sphi 0, %s100
      %s103 = sphi 0, %s102
      %s117 = sphi 0, %s103
      %s127 = sphi 0, %s129
      %s130 = sphi 0, %s127
      %s131 = sphi 0, %s130
      %s147 = sphi 0, %s131
    $region4: #{tpu_custom_call.1} parent=1 // loop_header_branch
      %19 = sbr.rel (%p17) target = $region8
    $region5: #{tpu_custom_call.1} parent=1 // loop_body
      %s21 = ssub.s32 %s16, 1
      %s22 = ssub.s32 %s16, 2
      %s32 = sadd.s32 1, %s25
      %p33 = scmp.ge.s32.totalorder %s32, 2
      %s34 = scalar_select %p33, 0, %s32
      %s35 = sadd.s32 1, %s24
      %s36 = scalar_select %p33, %s35, %s24
      %p37 = scmp.ge.s32.totalorder %s36, 2
      %s38 = scalar_select %p37, 0, %s36
      %s39 = sadd.s32 1, %s23
      %s40 = scalar_select %p37, %s39, %s23
      %p41 = scmp.ge.s32.totalorder %s40, 2
      %s42 = scalar_select %p41, 0, %s40
      %s43 = smul.u32 %s24, 2
      %s44 = sadd.s32 %s43, %s25
      %p45 = scmp.lt.s32.totalorder %s44, 2
      %s46 = scalar_select %p45, %s44, 2
      %s47 = smul.u32 %s38, 2
      %s48 = sadd.s32 %s47, %s34
      %p49 = scmp.lt.s32.totalorder %s48, 2
      %s50 = scalar_select %p49, %s48, 2
      %s51 = ssub.s32 %s23, %s42
      %s52 = ssub.s32 %s46, %s50
      %s53 = sor.u32 %s51, %s52
      %p54 = scmp.eq.s32.totalorder %s53, 0
      %s56 = sadd.s32 %s55, 1
      %s57 = scalar_select %p54, %s55, %s56
      %p60 = pneg %p54
      %p61 = scmp.eq.s32.totalorder %s16, 7
      %p62 = por %p60, %p61
      %p63 = scmp.ne.s32.totalorder %s55, %s58
      %p64 = scmp.eq.s32.totalorder %s16, 0
      %p65 = por %p63, %p64
      %p66 = scmp.ne.s32.totalorder %s55, %s58
      %p67 = scmp.eq.s32.totalorder %s21, 7
      %p68 = por %p66, %p67
      %p69 = scmp.ne.s32.totalorder %s58, %s59
      %p70 = scmp.eq.s32.totalorder %s21, 0
      %p71 = por %p69, %p70
      %p72 = scmp.ne.s32.totalorder %s58, %s59
      %p73 = scmp.eq.s32.totalorder %s22, 7
      %p74 = por %p72, %p73
      %p76 = scmp.ne.s32.totalorder %s59, %s75
      %p77 = scmp.eq.s32.totalorder %s22, 0
      %p78 = por %p76, %p77
      %s80 = sadd.s32 %s79, 1
      %p83 = scmp.eq.s32.totalorder %s16, 7
      %p84 = scmp.ne.s32.totalorder %s79, %s81
      %p85 = scmp.eq.s32.totalorder %s16, 0
      %p86 = por %p84, %p85
      %p87 = scmp.ne.s32.totalorder %s79, %s81
      %p88 = scmp.eq.s32.totalorder %s21, 7
      %p89 = por %p87, %p88
      %p90 = scmp.ne.s32.totalorder %s81, %s82
      %p91 = scmp.eq.s32.totalorder %s21, 0
      %p92 = por %p90, %p91
      %p93 = scmp.ne.s32.totalorder %s81, %s82
      %p94 = scmp.eq.s32.totalorder %s22, 7
      %p95 = por %p93, %p94
      %p97 = scmp.ne.s32.totalorder %s82, %s96
      %p98 = scmp.eq.s32.totalorder %s22, 0
      %p99 = por %p97, %p98
      %s101 = sadd.s32 %s100, 1
      %p104 = scmp.eq.s32.totalorder %s16, 7
      %p105 = scmp.ne.s32.totalorder %s100, %s102
      %p106 = scmp.eq.s32.totalorder %s16, 0
      %p107 = por %p105, %p106
      %p108 = scmp.ne.s32.totalorder %s100, %s102
      %p109 = scmp.eq.s32.totalorder %s21, 7
      %p110 = por %p108, %p109
      %p111 = scmp.ne.s32.totalorder %s102, %s103
      %p112 = scmp.eq.s32.totalorder %s21, 0
      %p113 = por %p111, %p112
      %p114 = scmp.ne.s32.totalorder %s102, %s103
      %p115 = scmp.eq.s32.totalorder %s22, 7
      %p116 = por %p114, %p115
      %p118 = scmp.ne.s32.totalorder %s103, %s117
      %p119 = scmp.eq.s32.totalorder %s22, 0
      %p120 = por %p118, %p119
      %s121 = smul.u32 %s23, 2
      %s122 = sadd.s32 %s121, %s24
      %s123 = smul.u32 %s42, 2
      %s124 = sadd.s32 %s123, %s38
      %s125 = ssub.s32 %s122, %s124
      %p126 = scmp.eq.s32.totalorder %s125, 0
      %s128 = sadd.s32 %s127, 1
      %s129 = scalar_select %p126, %s127, %s128
      %p132 = pneg %p126
      %p133 = scmp.eq.s32.totalorder %s16, 7
      %p134 = por %p132, %p133
      %p135 = scmp.ne.s32.totalorder %s127, %s130
      %p136 = scmp.eq.s32.totalorder %s16, 0
      %p137 = por %p135, %p136
      %p138 = scmp.ne.s32.totalorder %s127, %s130
      %p139 = scmp.eq.s32.totalorder %s21, 7
      %p140 = por %p138, %p139
      %p141 = scmp.ne.s32.totalorder %s130, %s131
      %p142 = scmp.eq.s32.totalorder %s21, 0
      %p143 = por %p141, %p142
      %p144 = scmp.ne.s32.totalorder %s130, %s131
      %p145 = scmp.eq.s32.totalorder %s22, 7
      %p146 = por %p144, %p145
      %p148 = scmp.ne.s32.totalorder %s131, %s147
      %p149 = scmp.eq.s32.totalorder %s22, 0
      %p150 = por %p148, %p149
      %p151 = scmp.le.s32.totalorder 1, %s16
      %p152 = scmp.lt.s32.totalorder %s16, 9
      %p153 = pnand %p151, %p152
      %p154 = pneg %p153
      // Predicated region
      $region9: #{tpu_custom_call.1} parent=5 // pred_check
        _
      $region10: #{tpu_custom_call.1} parent=5 // pred_check_branch
        %156 = sbr.rel (%p153) target = $region12
      $region11: #{tpu_custom_call.1} parent=5 // pred_region
        %s157 = ssub.s32 %s16, 1
        // Predicated region
        $region13: #{tpu_custom_call.1} parent=11 // pred_check
          %p158 = pneg %p92
        $region14: #{tpu_custom_call.1} parent=11 // pred_check_branch
          %160 = sbr.rel (%p158) target = $region16
        $region15: #{tpu_custom_call.1} parent=11 // pred_region
          %s162 = ssub.s32 1024, 1024
          %163 = vsyncadd [#allocation6], %s162
          %s164 = sshll.u32 [#allocation5], 4
          %s165 = int_to_ptr.vmem [resolvable:$true] %s164
          %170 = dma.hbm_to_vmem [thread:$0]  %s1, 1024, %s165, [#allocation6], 64, 64, 4
        $region16: #{tpu_custom_call.1} parent=11 // pred_fallthru
          _
        // Predicated region
        $region17: #{tpu_custom_call.1} parent=11 // pred_check
          %p171 = pneg %p113
        $region18: #{tpu_custom_call.1} parent=11 // pred_check_branch
          %173 = sbr.rel (%p171) target = $region20
        $region19: #{tpu_custom_call.1} parent=11 // pred_region
          _
        $region20: #{tpu_custom_call.1} parent=11 // pred_fallthru
          _
      $region12: #{tpu_custom_call.1} parent=5 // pred_fallthru
        _
      %p174 = scmp.lt.s32.totalorder %s16, 8
      // Predicated region
      $region21: #{tpu_custom_call.1} parent=5 // pred_check
        %p175 = pneg %p174
      $region22: #{tpu_custom_call.1} parent=5 // pred_check_branch
        %177 = sbr.rel (%p175) target = $region24
      $region23: #{tpu_custom_call.1} parent=5 // pred_region
        // Predicated region
        $region25: #{tpu_custom_call.1} parent=23 // pred_check
          %p178 = pneg %p65
        $region26: #{tpu_custom_call.1} parent=23 // pred_check_branch
          %180 = sbr.rel (%p178) target = $region28
        $region27: #{tpu_custom_call.1} parent=23 // pred_region
          %s181 = sand.u32 %s55, 1
          %s182 = scalar_lea.sflag [#allocation3], %s181
          %s183 = sand.u32 %s55, 1
          %s184 = smul.addr %s183, 96
          %s185 = scalar_lea.vmem [#allocation2], %s184
          %s186 = smul.u32 %s24, 2
          %s187 = sadd.s32 %s186, %s25
          %p188 = scmp.lt.s32.totalorder %s187, 2
          %s189 = scalar_select %p188, %s187, 2
          %s190 = smul.u32 12, %s189
          %s191 = ssub.s32 32, %s190
          %p192 = scmp.lt.s32.totalorder %s191, 12
          %s193 = scalar_select %p192, %s191, 12
          %s194 = smul.u32 128, %s193
          %s196 = ssub.s32 1536, %s194
          %197 = vsyncadd %s182, %s196
          %p198 = scmp.ne.s32.totalorder 0, %s194
          %s199 = smul.addr %s23, 32
          %s200 = sadd.s32 %s190, %s199
          %s201 = smul.addr %s200, 128
          %s202 = scalar_lea.hbm %s0, %s201
          %s203 = smul.u32 8, %s193
          %s204 = sshll.u32 %s185, 4
          %s205 = int_to_ptr.vmem [resolvable:$true] %s204
          %s206 = sshll.u32 %s203, 4
          %210 = dma.hbm_to_vmem [thread:$0]  (%p198), %s202, %s206, %s205, %s182, 128, 128, 8
        $region28: #{tpu_custom_call.1} parent=23 // pred_fallthru
          _
      $region24: #{tpu_custom_call.1} parent=5 // pred_fallthru
        _
      %p211 = scmp.le.s32.totalorder 1, %s16
      %p212 = scmp.lt.s32.totalorder %s16, 9
      %p213 = pnand %p211, %p212
      %p214 = pneg %p213
      // Predicated region
      $region29: #{tpu_custom_call.1} parent=5 // pred_check
        _
      $region30: #{tpu_custom_call.1} parent=5 // pred_check_branch
        %216 = sbr.rel (%p213) target = $region32
      $region31: #{tpu_custom_call.1} parent=5 // pred_region
        %s217 = ssub.s32 %s16, 1
        %s218 = sand.u32 %s58, 1
        %s219 = scalar_lea.sflag [#allocation3], %s218
        %s220 = sand.u32 %s58, 1
        %s221 = smul.addr %s220, 96
        %s222 = scalar_lea.vmem [#allocation2], %s221
        // Predicated region
        $region33: #{tpu_custom_call.1} parent=31 // pred_check
          %p223 = pneg %p71
        $region34: #{tpu_custom_call.1} parent=31 // pred_check_branch
          %225 = sbr.rel (%p223) target = $region36
        $region35: #{tpu_custom_call.1} parent=31 // pred_region
          %226 = dma.done %s219, 1536
        $region36: #{tpu_custom_call.1} parent=31 // pred_fallthru
          _
        // Predicated region
        $region37: #{tpu_custom_call.1} parent=31 // pred_check
          %p227 = pneg %p92
        $region38: #{tpu_custom_call.1} parent=31 // pred_check_branch
          %229 = sbr.rel (%p227) target = $region40
        $region39: #{tpu_custom_call.1} parent=31 // pred_region
          %230 = dma.done [#allocation6], 1024
        $region40: #{tpu_custom_call.1} parent=31 // pred_fallthru
          _
        %s231 = sand.u32 %s58, 1
        %s232 = scalar_lea.sflag [#allocation3], %s231
        %s233 = sand.u32 %s58, 1
        %s234 = smul.addr %s233, 96
        %s235 = scalar_lea.vmem [#allocation2], %s234
        %p236 = pneg %p71
        %p237 = pneg %p68
        %p238 = pneg %p92
        %p239 = pneg %p89
        %p240 = pneg %p113
        %p241 = pneg %p110
        %p242 = pneg %p143
        %p243 = pneg %p140
        %s244 = sand.u32 %s130, 1
        %s245 = scalar_lea.sflag [#allocation4], %s244
        %s246 = sand.u32 %s130, 1
        %s247 = scalar_lea.vmem [#allocation7], %s246
        %s248 = smul.u32 %s27, 2
        %s249 = sadd.s32 %s248, %s28
        %p250 = scmp.lt.s32.totalorder %s249, 2
        %s251 = scalar_select %p250, %s249, 2
        %s252 = smul.u32 12, %s251
        %s253 = ssub.s32 32, %s252
        %p254 = scmp.lt.s32.totalorder %s253, 12
        %s255 = scalar_select %p254, %s253, 12
        %s256 = smul.u32 128, %s255
        %s257 = smul.u32 %s26, 2
        %s258 = sadd.s32 %s257, %s27
        %p260 = scmp.eq.s32.totalorder %s28, 0
        // Predicated region
        $region41: #{tpu_custom_call.1} parent=31 // pred_check
          %p261 = pneg %p260
        $region42: #{tpu_custom_call.1} parent=31 // pred_check_branch
          %263 = sbr.rel (%p261) target = $region44
        $region43: #{tpu_custom_call.1} parent=31 // pred_region
          %264 = vst [vmem:[%s247] sm:$0x1] 0.0
        $region44: #{tpu_custom_call.1} parent=31 // pred_fallthru
          _
        %v265 = vld [vmem:[%s222] sm:$0xff]
        %v266 = vld [vmem:[%s222 + $0x8] sm:$0xff]
        %v267 = vld [vmem:[%s222 + $0x10] sm:$0xff]
        %v268 = vld [vmem:[%s222 + $0x18] sm:$0xff]
        %v269 = vld [vmem:[%s222 + $0x20] sm:$0xff]
        %v270 = vld [vmem:[%s222 + $0x28] sm:$0xff]
        %v271 = vld [vmem:[%s222 + $0x30] sm:$0xff]
        %v272 = vld [vmem:[%s222 + $0x38] sm:$0xff]
        %v273 = vld [vmem:[%s222 + $0x40] sm:$0xff]
        %v274 = vld [vmem:[%s222 + $0x48] sm:$0xff]
        %v275 = vld [vmem:[%s222 + $0x50] sm:$0xff]
        %v276 = vld [vmem:[%s222 + $0x58] sm:$0xff]
        %v277 = vld [vmem:[#allocation5] sm:$0xf]
        %v278 = vld [vmem:[#allocation5 + $0x4] sm:$0xf]
        %v279 = vld [vmem:[#allocation5 + $0x8] sm:$0xf]
        %v280 = vld [vmem:[#allocation5 + $0xc] sm:$0xf]
        %v281 = vld [vmem:[#allocation5 + $0x10] sm:$0xf]
        %v282 = vld [vmem:[#allocation5 + $0x14] sm:$0xf]
        %v283 = vld [vmem:[#allocation5 + $0x18] sm:$0xf]
        %v284 = vld [vmem:[#allocation5 + $0x1c] sm:$0xf]
        %v285 = vld [vmem:[#allocation5 + $0x20] sm:$0xf]
        %v286 = vld [vmem:[#allocation5 + $0x24] sm:$0xf]
        %v287 = vld [vmem:[#allocation5 + $0x28] sm:$0xf]
        %v288 = vld [vmem:[#allocation5 + $0x2c] sm:$0xf]
        %v289 = vld [vmem:[#allocation5 + $0x30] sm:$0xf]
        %v290 = vld [vmem:[#allocation5 + $0x34] sm:$0xf]
        %v291 = vld [vmem:[#allocation5 + $0x38] sm:$0xf]
        %v292 = vld [vmem:[#allocation5 + $0x3c] sm:$0xf]
        %v293 = vld [vmem:[%s2] sm:$0x1]
        %294 = vadd.xlane.f32.xlu0 %v265
        %v295 = vpop.xlane.xlu0 %294
        %296 = vadd.xlane.f32.xlu0 %v266
        %v297 = vpop.xlane.xlu0 %296
        %298 = vadd.xlane.f32.xlu0 %v267
        %v299 = vpop.xlane.xlu0 %298
        %300 = vadd.xlane.f32.xlu0 %v268
        %v301 = vpop.xlane.xlu0 %300
        %302 = vadd.xlane.f32.xlu0 %v269
        %v303 = vpop.xlane.xlu0 %302
        %304 = vadd.xlane.f32.xlu0 %v270
        %v305 = vpop.xlane.xlu0 %304
        %306 = vadd.xlane.f32.xlu0 %v271
        %v307 = vpop.xlane.xlu0 %306
        %308 = vadd.xlane.f32.xlu0 %v272
        %v309 = vpop.xlane.xlu0 %308
        %310 = vadd.xlane.f32.xlu0 %v273
        %v311 = vpop.xlane.xlu0 %310
        %312 = vadd.xlane.f32.xlu0 %v274
        %v313 = vpop.xlane.xlu0 %312
        %314 = vadd.xlane.f32.xlu0 %v275
        %v315 = vpop.xlane.xlu0 %314
        %316 = vadd.xlane.f32.xlu0 %v276
        %v317 = vpop.xlane.xlu0 %316
        %v318 = vmul.f32 %v295, 0.25
        %v319 = vmul.f32 %v297, 0.25
        %v320 = vmul.f32 %v299, 0.25
        %v321 = vmul.f32 %v301, 0.25
        %v322 = vmul.f32 %v303, 0.25
        %v323 = vmul.f32 %v305, 0.25
        %v324 = vmul.f32 %v307, 0.25
        %v325 = vmul.f32 %v309, 0.25
        %v326 = vmul.f32 %v311, 0.25
        %v327 = vmul.f32 %v313, 0.25
        %v328 = vmul.f32 %v315, 0.25
        %v329 = vmul.f32 %v317, 0.25
        %v330 = vsub.f32 %v265, %v318
        %v331 = vsub.f32 %v266, %v319
        %v332 = vsub.f32 %v267, %v320
        %v333 = vsub.f32 %v268, %v321
        %v334 = vsub.f32 %v269, %v322
        %v335 = vsub.f32 %v270, %v323
        %v336 = vsub.f32 %v271, %v324
        %v337 = vsub.f32 %v272, %v325
        %v338 = vsub.f32 %v273, %v326
        %v339 = vsub.f32 %v274, %v327
        %v340 = vsub.f32 %v275, %v328
        %v341 = vsub.f32 %v276, %v329
        %v342 = vlaneseq
        %v343 = vand.u32 %v342, 127
        %vm344 = vcmp.lt.s32.totalorder %v343, 4
        %v345 = vsel %vm344, %v330, 0.0
        %v346 = vsel %vm344, %v331, 0.0
        %v347 = vsel %vm344, %v332, 0.0
        %v348 = vsel %vm344, %v333, 0.0
        %v349 = vsel %vm344, %v334, 0.0
        %v350 = vsel %vm344, %v335, 0.0
        %v351 = vsel %vm344, %v336, 0.0
        %v352 = vsel %vm344, %v337, 0.0
        %v353 = vsel %vm344, %v338, 0.0
        %v354 = vsel %vm344, %v339, 0.0
        %v355 = vsel %vm344, %v340, 0.0
        %v356 = vsel %vm344, %v341, 0.0
        %v357 = vmul.f32 %v345, %v345
        %v358 = vmul.f32 %v346, %v346
        %v359 = vmul.f32 %v347, %v347
        %v360 = vmul.f32 %v348, %v348
        %v361 = vmul.f32 %v349, %v349
        %v362 = vmul.f32 %v350, %v350
        %v363 = vmul.f32 %v351, %v351
        %v364 = vmul.f32 %v352, %v352
        %v365 = vmul.f32 %v353, %v353
        %v366 = vmul.f32 %v354, %v354
        %v367 = vmul.f32 %v355, %v355
        %v368 = vmul.f32 %v356, %v356
        %369 = vadd.xlane.f32.xlu0 %v357
        %v370 = vpop.xlane.xlu0 %369
        %371 = vadd.xlane.f32.xlu0 %v358
        %v372 = vpop.xlane.xlu0 %371
        %373 = vadd.xlane.f32.xlu0 %v359
        %v374 = vpop.xlane.xlu0 %373
        %375 = vadd.xlane.f32.xlu0 %v360
        %v376 = vpop.xlane.xlu0 %375
        %377 = vadd.xlane.f32.xlu0 %v361
        %v378 = vpop.xlane.xlu0 %377
        %379 = vadd.xlane.f32.xlu0 %v362
        %v380 = vpop.xlane.xlu0 %379
        %381 = vadd.xlane.f32.xlu0 %v363
        %v382 = vpop.xlane.xlu0 %381
        %383 = vadd.xlane.f32.xlu0 %v364
        %v384 = vpop.xlane.xlu0 %383
        %385 = vadd.xlane.f32.xlu0 %v365
        %v386 = vpop.xlane.xlu0 %385
        %387 = vadd.xlane.f32.xlu0 %v366
        %v388 = vpop.xlane.xlu0 %387
        %389 = vadd.xlane.f32.xlu0 %v367
        %v390 = vpop.xlane.xlu0 %389
        %391 = vadd.xlane.f32.xlu0 %v368
        %v392 = vpop.xlane.xlu0 %391
        %v393 = vmul.f32 %v370, 0.25
        %v394 = vmul.f32 %v372, 0.25
        %v395 = vmul.f32 %v374, 0.25
        %v396 = vmul.f32 %v376, 0.25
        %v397 = vmul.f32 %v378, 0.25
        %v398 = vmul.f32 %v380, 0.25
        %v399 = vmul.f32 %v382, 0.25
        %v400 = vmul.f32 %v384, 0.25
        %v401 = vmul.f32 %v386, 0.25
        %v402 = vmul.f32 %v388, 0.25
        %v403 = vmul.f32 %v390, 0.25
        %v404 = vmul.f32 %v392, 0.25
        %v405 = vadd.f32 %v393, 1e-06
        %v406 = vadd.f32 %v394, 1e-06
        %v407 = vadd.f32 %v395, 1e-06
        %v408 = vadd.f32 %v396, 1e-06
        %v409 = vadd.f32 %v397, 1e-06
        %v410 = vadd.f32 %v398, 1e-06
        %v411 = vadd.f32 %v399, 1e-06
        %v412 = vadd.f32 %v400, 1e-06
        %v413 = vadd.f32 %v401, 1e-06
        %v414 = vadd.f32 %v402, 1e-06
        %v415 = vadd.f32 %v403, 1e-06
        %v416 = vadd.f32 %v404, 1e-06
        %v417 = vrsqrt.pop %v405
        %v418 = vrsqrt.pop %v406
        %v419 = vrsqrt.pop %v407
        %v420 = vrsqrt.pop %v408
        %v421 = vrsqrt.pop %v409
        %v422 = vrsqrt.pop %v410
        %v423 = vrsqrt.pop %v411
        %v424 = vrsqrt.pop %v412
        %v425 = vrsqrt.pop %v413
        %v426 = vrsqrt.pop %v414
        %v427 = vrsqrt.pop %v415
        %v428 = vrsqrt.pop %v416
        %v429 = vmul.f32 %v345, %v417
        %v430 = vmul.f32 %v346, %v418
        %v431 = vmul.f32 %v347, %v419
        %v432 = vmul.f32 %v348, %v420
        %v433 = vmul.f32 %v349, %v421
        %v434 = vmul.f32 %v350, %v422
        %v435 = vmul.f32 %v351, %v423
        %v436 = vmul.f32 %v352, %v424
        %v437 = vmul.f32 %v353, %v425
        %v438 = vmul.f32 %v354, %v426
        %v439 = vmul.f32 %v355, %v427
        %v440 = vmul.f32 %v356, %v428
        %v441 = vpack.c.bf16 %v430, %v429
        %v442 = vpack.c.bf16 %v432, %v431
        %v443 = vpack.c.bf16 %v434, %v433
        %v444 = vpack.c.bf16 %v436, %v435
        %v445 = vpack.c.bf16 %v438, %v437
        %v446 = vpack.c.bf16 %v440, %v439
        %v448 = vlaneseq
        %v449 = vshrl.u32 %v448, 7
        %v450 = vsub.s32 0, %v449
        %v451 = vrot.slane %v293, %v450
        %v469 = vunpack.c.l.b16 %v277
        %v470 = vunpack.c.l.b16 %v278
        %v471 = vunpack.c.l.b16 %v279
        %v472 = vunpack.c.l.b16 %v280
        %v473 = vunpack.c.l.b16 %v281
        %v474 = vunpack.c.l.b16 %v282
        %v475 = vunpack.c.l.b16 %v283
        %v476 = vunpack.c.l.b16 %v284
        %v477 = vunpack.c.l.b16 %v285
        %v478 = vunpack.c.l.b16 %v286
        %v479 = vunpack.c.l.b16 %v287
        %v480 = vunpack.c.l.b16 %v288
        %v481 = vunpack.c.l.b16 %v289
        %v482 = vunpack.c.l.b16 %v290
        %v483 = vunpack.c.l.b16 %v291
        %v484 = vunpack.c.l.b16 %v292
        %v485 = vpack.c.b16 %v470, %v469
        %v486 = vpack.c.b16 %v472, %v471
        %v487 = vpack.c.b16 %v474, %v473
        %v488 = vpack.c.b16 %v476, %v475
        %v489 = vpack.c.b16 %v478, %v477
        %v490 = vpack.c.b16 %v480, %v479
        %v491 = vpack.c.b16 %v482, %v481
        %v492 = vpack.c.b16 %v484, %v483
        %501 = vmatprep.subr.bf16.mxu0 0
        %502 = vmatpush1.bf16.msra.mxu0 %v492
        %503 = vmatprep.subr.bf16.mxu0 0
        %504 = vmatpush1.bf16.msra.mxu0 %v491
        %505 = vmatprep.subr.bf16.mxu0 0
        %506 = vmatpush1.bf16.msra.mxu0 %v490
        %507 = vmatprep.subr.bf16.mxu0 0
        %508 = vmatpush1.bf16.msra.mxu0 %v489
        %509 = vmatprep.subr.bf16.mxu0 0
        %510 = vmatpush1.bf16.msra.mxu0 %v488
        %511 = vmatprep.subr.bf16.mxu0 0
        %512 = vmatpush1.bf16.msra.mxu0 %v487
        %513 = vmatprep.subr.bf16.mxu0 0
        %514 = vmatpush1.bf16.msra.mxu0 %v486
        %515 = vmatprep.subr.bf16.mxu0 0
        %516 = vmatpush1.bf16.msra.mxu0 %v485
        %517 = vmatprep.subr.bf16.mxu0 0
        %518 = vmatpush2.bf16.msra.mxu0 0
        %519 = vmatprep.subr.bf16.mxu0 0
        %520 = vmatpush2.bf16.msra.mxu0 0
        %521 = vmatprep.subr.bf16.mxu0 0
        %522 = vmatpush2.bf16.msra.mxu0 0
        %523 = vmatprep.subr.bf16.mxu0 0
        %524 = vmatpush2.bf16.msra.mxu0 0
        %525 = vmatprep.subr.bf16.mxu0 0
        %526 = vmatpush2.bf16.msra.mxu0 0
        %527 = vmatprep.subr.bf16.mxu0 0
        %528 = vmatpush2.bf16.msra.mxu0 0
        %529 = vmatprep.subr.bf16.mxu0 0
        %530 = vmatpush2.bf16.msra.mxu0 0
        %531 = vmatprep.subr.bf16.mxu0 0
        %532 = vmatpush2.bf16.msra.mxu0 0
        %533 = vmatprep.mubr.bf16.mxu0 0
        %534 = vmatmul.mubr.bf16.gmra.mxu0 %v441
        %v535 = vpop.f32.mrf.mxu0
        %v536 = vadd.f32 %v451, %v535
        %v537 = vpop.f32.mrf.mxu0
        %v538 = vpop.f32.mrf.mxu0
        %v539 = vadd.f32 %v451, %v538
        %v540 = vpop.f32.mrf.mxu0
        %541 = vmatprep.mubr.bf16.mxu0 0
        %542 = vmatmul.mubr.bf16.gmra.mxu0 %v442
        %v543 = vpop.f32.mrf.mxu0
        %v544 = vadd.f32 %v451, %v543
        %v545 = vpop.f32.mrf.mxu0
        %v546 = vpop.f32.mrf.mxu0
        %v547 = vadd.f32 %v451, %v546
        %v548 = vpop.f32.mrf.mxu0
        %549 = vmatprep.mubr.bf16.mxu0 0
        %550 = vmatmul.mubr.bf16.gmra.mxu0 %v443
        %v551 = vpop.f32.mrf.mxu0
        %v552 = vadd.f32 %v451, %v551
        %v553 = vpop.f32.mrf.mxu0
        %v554 = vpop.f32.mrf.mxu0
        %v555 = vadd.f32 %v451, %v554
        %v556 = vpop.f32.mrf.mxu0
        %557 = vmatprep.mubr.bf16.mxu0 0
        %558 = vmatmul.mubr.bf16.gmra.mxu0 %v444
        %v559 = vpop.f32.mrf.mxu0
        %v560 = vadd.f32 %v451, %v559
        %v561 = vpop.f32.mrf.mxu0
        %v562 = vpop.f32.mrf.mxu0
        %v563 = vadd.f32 %v451, %v562
        %v564 = vpop.f32.mrf.mxu0
        %565 = vmatprep.mubr.bf16.mxu0 0
        %566 = vmatmul.mubr.bf16.gmra.mxu0 %v445
        %v567 = vpop.f32.mrf.mxu0
        %v568 = vadd.f32 %v451, %v567
        %v569 = vpop.f32.mrf.mxu0
        %v570 = vpop.f32.mrf.mxu0
        %v571 = vadd.f32 %v451, %v570
        %v572 = vpop.f32.mrf.mxu0
        %573 = vmatprep.mubr.bf16.mxu0 0
        %574 = vmatmul.mubr.bf16.gmra.mxu0 %v446
        %v575 = vpop.f32.mrf.mxu0
        %v576 = vadd.f32 %v451, %v575
        %v577 = vpop.f32.mrf.mxu0
        %v578 = vpop.f32.mrf.mxu0
        %v579 = vadd.f32 %v451, %v578
        %v580 = vpop.f32.mrf.mxu0
        %581 = vdwg.mxu0
        %v582 = vmul.f32 %v536, 0.5
        %v583 = vmul.f32 %v539, 0.5
        %v584 = vmul.f32 %v544, 0.5
        %v585 = vmul.f32 %v547, 0.5
        %v586 = vmul.f32 %v552, 0.5
        %v587 = vmul.f32 %v555, 0.5
        %v588 = vmul.f32 %v560, 0.5
        %v589 = vmul.f32 %v563, 0.5
        %v590 = vmul.f32 %v568, 0.5
        %v591 = vmul.f32 %v571, 0.5
        %v592 = vmul.f32 %v576, 0.5
        %v593 = vmul.f32 %v579, 0.5
        %v594 = vmul.f32 %v536, 0.70710677
        %v595 = vmul.f32 %v539, 0.70710677
        %v596 = vmul.f32 %v544, 0.70710677
        %v597 = vmul.f32 %v547, 0.70710677
        %v598 = vmul.f32 %v552, 0.70710677
        %v599 = vmul.f32 %v555, 0.70710677
        %v600 = vmul.f32 %v560, 0.70710677
        %v601 = vmul.f32 %v563, 0.70710677
        %v602 = vmul.f32 %v568, 0.70710677
        %v603 = vmul.f32 %v571, 0.70710677
        %v604 = vmul.f32 %v576, 0.70710677
        %v605 = vmul.f32 %v579, 0.70710677
        %v606 = verf.f32.pop %v594
        %v607 = verf.f32.pop %v595
        %v608 = verf.f32.pop %v596
        %v609 = verf.f32.pop %v597
        %v610 = verf.f32.pop %v598
        %v611 = verf.f32.pop %v599
        %v612 = verf.f32.pop %v600
        %v613 = verf.f32.pop %v601
        %v614 = verf.f32.pop %v602
        %v615 = verf.f32.pop %v603
        %v616 = verf.f32.pop %v604
        %v617 = verf.f32.pop %v605
        %v618 = vadd.f32 %v606, 1.0
        %v619 = vadd.f32 %v607, 1.0
        %v620 = vadd.f32 %v608, 1.0
        %v621 = vadd.f32 %v609, 1.0
        %v622 = vadd.f32 %v610, 1.0
        %v623 = vadd.f32 %v611, 1.0
        %v624 = vadd.f32 %v612, 1.0
        %v625 = vadd.f32 %v613, 1.0
        %v626 = vadd.f32 %v614, 1.0
        %v627 = vadd.f32 %v615, 1.0
        %v628 = vadd.f32 %v616, 1.0
        %v629 = vadd.f32 %v617, 1.0
        %v630 = vmul.f32 %v582, %v618
        %v631 = vmul.f32 %v583, %v619
        %v632 = vmul.f32 %v584, %v620
        %v633 = vmul.f32 %v585, %v621
        %v634 = vmul.f32 %v586, %v622
        %v635 = vmul.f32 %v587, %v623
        %v636 = vmul.f32 %v588, %v624
        %v637 = vmul.f32 %v589, %v625
        %v638 = vmul.f32 %v590, %v626
        %v639 = vmul.f32 %v591, %v627
        %v640 = vmul.f32 %v592, %v628
        %v641 = vmul.f32 %v593, %v629
        %s642 = smul.u32 %s27, 2
        %s643 = sadd.s32 %s642, %s28
        %v644 = vlaneseq
        %v645 = vshrl.u32 %v644, 7
        %v646 = vadd.s32 %v645, 8
        %v647 = vadd.s32 %v645, 16
        %v648 = vadd.s32 %v645, 24
        %v649 = vadd.s32 %v645, 32
        %v650 = vadd.s32 %v645, 40
        %v651 = vadd.s32 %v645, 48
        %v652 = vadd.s32 %v645, 56
        %v653 = vadd.s32 %v645, 64
        %v654 = vadd.s32 %v645, 72
        %v655 = vadd.s32 %v645, 80
        %v656 = vadd.s32 %v645, 88
        %s657 = smul.u32 %s643, 96
        %v658 = vstv %s657
        %v659 = vadd.s32 %v645, %v658
        %v660 = vadd.s32 %v646, %v658
        %v661 = vadd.s32 %v647, %v658
        %v662 = vadd.s32 %v648, %v658
        %v663 = vadd.s32 %v649, %v658
        %v664 = vadd.s32 %v650, %v658
        %v665 = vadd.s32 %v651, %v658
        %v666 = vadd.s32 %v652, %v658
        %v667 = vadd.s32 %v653, %v658
        %v668 = vadd.s32 %v654, %v658
        %v669 = vadd.s32 %v655, %v658
        %v670 = vadd.s32 %v656, %v658
        %vm671 = vcmp.lt.s32.totalorder %v659, 256
        %vm672 = vcmp.lt.s32.totalorder %v660, 256
        %vm673 = vcmp.lt.s32.totalorder %v661, 256
        %vm674 = vcmp.lt.s32.totalorder %v662, 256
        %vm675 = vcmp.lt.s32.totalorder %v663, 256
        %vm676 = vcmp.lt.s32.totalorder %v664, 256
        %vm677 = vcmp.lt.s32.totalorder %v665, 256
        %vm678 = vcmp.lt.s32.totalorder %v666, 256
        %vm679 = vcmp.lt.s32.totalorder %v667, 256
        %vm680 = vcmp.lt.s32.totalorder %v668, 256
        %vm681 = vcmp.lt.s32.totalorder %v669, 256
        %vm682 = vcmp.lt.s32.totalorder %v670, 256
        %v683 = vsel %vm671, %v630, 0.0
        %v684 = vsel %vm672, %v631, 0.0
        %v685 = vsel %vm673, %v632, 0.0
        %v686 = vsel %vm674, %v633, 0.0
        %v687 = vsel %vm675, %v634, 0.0
        %v688 = vsel %vm676, %v635, 0.0
        %v689 = vsel %vm677, %v636, 0.0
        %v690 = vsel %vm678, %v637, 0.0
        %v691 = vsel %vm679, %v638, 0.0
        %v692 = vsel %vm680, %v639, 0.0
        %v693 = vsel %vm681, %v640, 0.0
        %v694 = vsel %vm682, %v641, 0.0
        %v695 = vld [vmem:[%s247] sm:$0x1]
        %v696 = vmul.f32 %v683, %v683
        %v697 = vmul.f32 %v684, %v684
        %v698 = vmul.f32 %v685, %v685
        %v699 = vmul.f32 %v686, %v686
        %v700 = vmul.f32 %v687, %v687
        %v701 = vmul.f32 %v688, %v688
        %v702 = vmul.f32 %v689, %v689
        %v703 = vmul.f32 %v690, %v690
        %v704 = vmul.f32 %v691, %v691
        %v705 = vmul.f32 %v692, %v692
        %v706 = vmul.f32 %v693, %v693
        %v707 = vmul.f32 %v694, %v694
        %v708 = vadd.f32 %v696, %v697
        %v709 = vadd.f32 %v708, %v698
        %v710 = vadd.f32 %v709, %v699
        %v711 = vadd.f32 %v710, %v700
        %v712 = vadd.f32 %v711, %v701
        %v713 = vadd.f32 %v712, %v702
        %v714 = vadd.f32 %v713, %v703
        %v715 = vadd.f32 %v714, %v704
        %v716 = vadd.f32 %v715, %v705
        %v717 = vadd.f32 %v716, %v706
        %v718 = vadd.f32 %v717, %v707
        %v719 = vrot.slane %v718, 4
        %v720 = vadd.f32 %v718, %v719
        %v721 = vrot.slane %v720, 2
        %v722 = vadd.f32 %v720, %v721
        %v723 = vrot.slane %v722, 1
        %v724 = vadd.f32 %v722, %v723
        %v725 = vadd.f32 %v695, %v724
        %726 = vst [vmem:[%s247] sm:$0x1] %v725
        %s727 = sand.u32 %s130, 1
        %s728 = scalar_lea.sflag [#allocation4], %s727
        %s729 = sand.u32 %s130, 1
        %s730 = scalar_lea.vmem [#allocation7], %s729
        // Predicated region
        $region45: #{tpu_custom_call.1} parent=31 // pred_check
          %p731 = pneg %p140
        $region46: #{tpu_custom_call.1} parent=31 // pred_check_branch
          %733 = sbr.rel (%p731) target = $region48
        $region47: #{tpu_custom_call.1} parent=31 // pred_region
          %s734 = smul.u32 %s26, 2
          %s735 = sadd.s32 %s734, %s27
          %s737 = ssub.s32 16, 16
          %738 = vsyncadd %s728, %s737
          %s739 = smul.addr %s735, 16
          %s740 = scalar_lea.hbm %s3, %s739
          %s742 = sshll.u32 %s730, 4
          %s743 = int_to_ptr.vmem [resolvable:$true] %s742
          %745 = dma.vmem_to_hbm [thread:$0]  %s743, 16, %s740, %s728
        $region48: #{tpu_custom_call.1} parent=31 // pred_fallthru
          _
      $region32: #{tpu_custom_call.1} parent=5 // pred_fallthru
        _
      %p746 = scmp.le.s32.totalorder 2, %s16
      // Predicated region
      $region49: #{tpu_custom_call.1} parent=5 // pred_check
        %p747 = pneg %p746
      $region50: #{tpu_custom_call.1} parent=5 // pred_check_branch
        %749 = sbr.rel (%p747) target = $region52
      $region51: #{tpu_custom_call.1} parent=5 // pred_region
        %s750 = ssub.s32 %s16, 2
        // Predicated region
        $region53: #{tpu_custom_call.1} parent=51 // pred_check
          %p751 = pneg %p146
        $region54: #{tpu_custom_call.1} parent=51 // pred_check_branch
          %753 = sbr.rel (%p751) target = $region56
        $region55: #{tpu_custom_call.1} parent=51 // pred_region
          %s754 = sand.u32 %s131, 1
          %s755 = scalar_lea.sflag [#allocation4], %s754
          %s756 = sand.u32 %s131, 1
          %s757 = scalar_lea.vmem [#allocation7], %s756
          %758 = dma.done %s755, 16
        $region56: #{tpu_custom_call.1} parent=51 // pred_fallthru
          _
      $region52: #{tpu_custom_call.1} parent=5 // pred_fallthru
        _
    $region6: #{tpu_custom_call.1} parent=1 // loop_footer
      %s20 = sadd.s32 1, %s16
    $region7: #{tpu_custom_call.1} parent=1 // loop_footer_branch
      %15 = sbr.rel target = $region3
    $region8: #{tpu_custom_call.1} parent=1 // loop_exit
      _
    %759 = vsyncpa [#allocation3], 1
    %s760 = scalar_lea.sflag [#allocation3], 1
    %761 = vsyncpa %s760, 1
    %762 = vsyncpa [#allocation6], 1
    %763 = vsyncpa [#allocation4], 1
    %s764 = scalar_lea.sflag [#allocation4], 1
    %765 = vsyncpa %s764, 1

</llo_original>
